<compile_context>
chip_gen: v7x
topology: tpu7x:2x2x1
jax: 0.10.0
libtpu: 0.0.40
codegen_flags: <defaults>
</compile_context>

<pallas_src>
import functools
import math

import jax
import jax.numpy as jnp
from jax.experimental import pallas as pl
from jax.experimental.pallas import tpu as pltpu


def _attention_block_kernel(
    bias_ref,             # (1, 1, T)  f32 additive key-padding bias (0 or -1e30)
    x_ref,                # (1, T, C)  f32 input block for this batch element
    wqkv_ref,             # (C, 3C)    fused pre-transposed [Wq*scale | Wk | Wv] (compute dtype)
    wot_ref,              # (C, C)     pre-transposed Wo (compute dtype)
    bqkv_ref,             # (1, 3C)    fused bias (bq pre-scaled), f32
    bo_ref,               # (1, C)     f32
    gamma_ref, beta_ref,  # (1, C)     f32 LayerNorm affine
    o_ref,                # (1, Tq, C) f32 output tile
    qkv_sc,               # (T, 3C)    VMEM scratch, compute dtype
    ctx_sc,               # (Tq, C)    VMEM scratch, compute dtype
    *,
    heads: int,
    proj_tile: int,
    exp_bf16: bool,
    approx_recip: bool,
):
    qi = pl.program_id(1)
    T = x_ref.shape[1]
    C = x_ref.shape[2]
    Tq = o_ref.shape[1]
    dh = C // heads
    cdt = qkv_sc.dtype

    # ---- step 0 of each batch element: LayerNorm + fused QKV projection (tiled over T) ----
    @pl.when(qi == 0)
    def _project():
        def body(i, carry):
            r0 = pl.multiple_of(i * proj_tile, proj_tile)
            x = x_ref[0, pl.ds(r0, proj_tile), :]                          # (tp, C) f32
            mu = jnp.mean(x, axis=-1, keepdims=True)
            var = jnp.mean((x - mu) * (x - mu), axis=-1, keepdims=True)
            xn = (x - mu) * jax.lax.rsqrt(var + 1e-5)
            xn = xn * gamma_ref[...] + beta_ref[...]
            xn_c = xn.astype(cdt)
            qkv = jnp.dot(xn_c, wqkv_ref[...],
                          preferred_element_type=jnp.float32) + bqkv_ref[...]
            qkv_sc[pl.ds(r0, proj_tile), :] = qkv.astype(cdt)
            return carry

        jax.lax.fori_loop(0, T // proj_tile, body, 0)

    # ---- steps >= 1: attention for query tile (qi - 1) ----
    @pl.when(qi > 0)
    def _attend():
        row0 = pl.multiple_of((qi - 1) * Tq, Tq)
        neg = bias_ref[0]                                                  # (1, T) f32
        dn = (((1,), (1,)), ((), ()))      # contract last dims of both operands (no .T)
        for h in range(heads):             # static loop, static lane offsets
            lo = h * dh
            qh = qkv_sc[pl.ds(row0, Tq), lo:lo + dh]                       # (Tq, dh)
            kh = qkv_sc[:, C + lo:C + lo + dh]                             # (T, dh)
            vh = qkv_sc[:, 2 * C + lo:2 * C + lo + dh]                     # (T, dh)
            s = jax.lax.dot_general(qh, kh, dn,
                                    preferred_element_type=jnp.float32)   # (Tq, T) f32
            s = s + neg                                                    # sublane broadcast
            s = s - jnp.max(s, axis=-1, keepdims=True)
            p = jnp.exp(s.astype(jnp.bfloat16)) if exp_bf16 else jnp.exp(s)
            denom = jnp.sum(p, axis=-1, keepdims=True, dtype=jnp.float32)  # f32 row-sum
            inv = pl.reciprocal(denom, approx=approx_recip)                # (Tq, 1) f32
            ctx_h = jnp.dot(p.astype(cdt), vh,
                            preferred_element_type=jnp.float32)            # (Tq, dh) f32
            ctx_sc[:, lo:lo + dh] = (ctx_h * inv).astype(cdt)              # lane-dense write

        out = jnp.dot(ctx_sc[...], wot_ref[...],
                      preferred_element_type=jnp.float32) + bo_ref[...]
        # Dropout: identity at inference.
        o_ref[0] = out.astype(o_ref.dtype)


def _device_kind():
    try:
        return jax.devices()[0].device_kind.lower()
    except Exception:
        return ""


def _vmem_capacity_bytes():
    try:
        return int(pltpu.get_tpu_info().vmem_capacity_bytes)
    except Exception:
        return 64 * 2 ** 20          # conservative (v7x-sized) fallback


def _pick_tile(total, target, mult):
    """Largest tile <= target that divides `total` and is a multiple of `mult`
    (falls back to the full extent when total <= target or no divisor exists)."""
    if total <= target:
        return total
    for t in range(target, mult - 1, -1):
        if total % t == 0 and t % mult == 0:
            return t
    return total


def _vmem_limit_bytes(T, tq, tp, C, cd_bytes, single_buffer_weights):
    wbuf = 1 if single_buffer_weights else 2
    weights = (3 * C * C + C * C) * cd_bytes * wbuf
    small = (3 * C + 3 * C) * 4 * wbuf                       # biases + gamma/beta (f32)
    x_in = 2 * T * C * 4                                      # f32 x block, double-buffered
    bias_in = 2 * T * 4
    out = 2 * tq * C * 4
    scr = (3 * T * C + tq * C) * cd_bytes                     # qkv + ctx scratches
    proj = tp * C * (8 + cd_bytes) + tp * 3 * C * (4 + cd_bytes)   # LN + QKV transients
    attn = 3 * tq * T * 4 + 4 * tq * C * 4                    # scores/probs/ctx headroom
    est = weights + small + x_in + bias_in + out + scr + max(proj, attn)
    cap = _vmem_capacity_bytes()
    limit = min(max(int(1.5 * est), 32 * 2 ** 20), cap - 8 * 2 ** 20)
    return int(max(limit, 16 * 2 ** 20))


def _build_and_run(bias_f, x_btc, flat_params, heads, tq, tp, compute_dtype,
                   exp_bf16, approx_recip, single_buffer_weights):
    B, T, C = x_btc.shape
    nq = T // tq
    cd_bytes = jnp.dtype(compute_dtype).itemsize

    const = lambda b, qi: (0, 0)
    if single_buffer_weights:
        def w_spec(shape):
            return pl.BlockSpec(shape, const, pipeline_mode=pl.Buffered(1))
    else:
        def w_spec(shape):
            return pl.BlockSpec(shape, const)

    kernel = functools.partial(_attention_block_kernel, heads=heads, proj_tile=tp,
                               exp_bf16=exp_bf16, approx_recip=approx_recip)

    call = pl.pallas_call(
        kernel,
        out_shape=jax.ShapeDtypeStruct((B, T, C), jnp.float32),
        grid_spec=pltpu.PrefetchScalarGridSpec(
            num_scalar_prefetch=0,
            grid=(B, nq + 1),                     # qi==0: projection, qi>=1: attention tiles
            in_specs=[
                pl.BlockSpec((1, 1, T), lambda b, qi: (b, 0, 0)),    # key-padding bias
                pl.BlockSpec((1, T, C), lambda b, qi: (b, 0, 0)),    # x (DMA'd once per b)
                w_spec((C, 3 * C)),                                   # fused WqkvT (pre-scaled)
                w_spec((C, C)),                                       # WoT
                w_spec((1, 3 * C)),                                   # fused bqkv (pre-scaled)
                w_spec((1, C)),                                       # bo
                w_spec((1, C)), w_spec((1, C)),                       # gamma, beta
            ],
            out_specs=pl.BlockSpec(
                (1, tq, C), lambda b, qi: (b, jnp.maximum(qi - 1, 0), 0)),
            scratch_shapes=[pltpu.VMEM((T, 3 * C), compute_dtype),
                            pltpu.VMEM((tq, C), compute_dtype)],
        ),
        compiler_params=pltpu.CompilerParams(
            dimension_semantics=("parallel", "arbitrary"),
            vmem_limit_bytes=_vmem_limit_bytes(T, tq, tp, C, cd_bytes,
                                               single_buffer_weights),
        ),
    )
    return call(bias_f, x_btc, *flat_params)


def conformer_attention_block(x_tbc, key_padding_mask, params, heads,
                              compute_dtype=jnp.bfloat16):
    """x_tbc: (T, B, C) f32; key_padding_mask: (B, T) bool (True == padded key)."""
    T, B, C = x_tbc.shape
    assert C % heads == 0
    dh = C // heads
    scale = 1.0 / math.sqrt(dh)
    cd = jnp.dtype(compute_dtype)
    is_bf16 = cd == jnp.dtype(jnp.bfloat16)
    kind = _device_kind()
    wide_mxu = ("v6" in kind) or ("v7" in kind)

    x_btc = jnp.transpose(x_tbc, (1, 0, 2)).astype(jnp.float32)            # (B, T, C)
    # Additive key-padding bias computed once in the wrapper (tiny (B, T) op).
    bias_f = jnp.where(key_padding_mask, jnp.float32(-1e30),
                       jnp.float32(0.0)).reshape(B, 1, T)

    # Fused, pre-transposed QKV weight (one in-kernel (C, 3C) matmul) with the 1/sqrt(dh)
    # softmax scale folded into the Q slice / bq; pre-transposed output weight.
    wqkv_t = jnp.concatenate(
        [(params["wq"].astype(jnp.float32) * scale).T,
         params["wk"].astype(jnp.float32).T,
         params["wv"].astype(jnp.float32).T], axis=1).astype(cd)           # (C, 3C)
    bqkv = jnp.concatenate(
        [params["bq"].astype(jnp.float32) * scale,
         params["bk"].astype(jnp.float32),
         params["bv"].astype(jnp.float32)]).reshape(1, 3 * C)
    flat_params = (
        wqkv_t,
        params["wo"].astype(jnp.float32).T.astype(cd),
        bqkv,
        params["bo"].astype(jnp.float32).reshape(1, C),
        params["gamma"].astype(jnp.float32).reshape(1, C),
        params["beta"].astype(jnp.float32).reshape(1, C),
    )

    mult = 16 if is_bf16 else 8                 # bf16 sublane packing => 16-row alignment
    q_target = 256 if wide_mxu else 128         # fill the 2x256x256 MXU on v6e / v7x
    tq = _pick_tile(T, q_target, mult)
    tp = _pick_tile(T, 256, mult)               # projection row tile (bounds f32 transients)

    exp_bf16 = is_bf16 and wide_mxu             # bf16 EUP exp on v6e/v7x only
    approx_recip = is_bf16                      # keep the f32 path an exact-math check

    # TODO(synk): for very long sequences on v7x (full-T K/V scratch + (Tq, T) scores nearing
    # ~48 MiB) switch the inner loop to flash-style online-softmax KV tiling.

    try:
        out_btc = _build_and_run(bias_f, x_btc, flat_params, heads, tq, tp, cd,
                                 exp_bf16, approx_recip, True)
    except Exception as e:
        # Only fall back (default double-buffered weights) if this jax build rejects
        # pipeline_mode=pl.Buffered(1); re-raise anything else.
        msg = str(e)
        if ("Buffered" in msg) or ("pipeline_mode" in msg) or ("buffer_count" in msg):
            out_btc = _build_and_run(bias_f, x_btc, flat_params, heads, tq, tp, cd,
                                     exp_bf16, approx_recip, False)
        else:
            raise

    return jnp.transpose(out_btc, (1, 0, 2))                               # back to (T, B, C)


def _reference(x_tbc, key_padding_mask, params, heads):
    """Pure-JAX f32 reference of the same forward pass."""
    T, B, C = x_tbc.shape
    dh = C // heads
    x = jnp.transpose(x_tbc, (1, 0, 2))                                    # (B, T, C)
    mu = jnp.mean(x, -1, keepdims=True)
    var = jnp.mean((x - mu) ** 2, -1, keepdims=True)
    xn = (x - mu) / jnp.sqrt(var + 1e-5) * params["gamma"] + params["beta"]
    q = (xn @ params["wq"].T + params["bq"]) * (dh ** -0.5)
    k = xn @ params["wk"].T + params["bk"]
    v = xn @ params["wv"].T + params["bv"]
    q = q.reshape(B, T, heads, dh).transpose(0, 2, 1, 3)
    k = k.reshape(B, T, heads, dh).transpose(0, 2, 1, 3)
    v = v.reshape(B, T, heads, dh).transpose(0, 2, 1, 3)
    s = jnp.einsum("bhqd,bhkd->bhqk", q, k)
    s = jnp.where(key_padding_mask[:, None, None, :], -1e30, s)
    p = jax.nn.softmax(s, axis=-1)
    o = jnp.einsum("bhqk,bhkd->bhqd", p, v).transpose(0, 2, 1, 3).reshape(B, T, C)
    o = o @ params["wo"].T + params["bo"]
    return jnp.transpose(o, (1, 0, 2))


if __name__ == "__main__":
    # Small shapes consistent with the module's (T, B, C) forward.
    T, B, C, H = 8, 2, 32, 4
    key = jax.random.PRNGKey(0)
    ks = jax.random.split(key, 10)

    params = {
        "wq": 0.1 * jax.random.normal(ks[0], (C, C), jnp.float32),
        "bq": 0.1 * jax.random.normal(ks[1], (C,), jnp.float32),
        "wk": 0.1 * jax.random.normal(ks[2], (C, C), jnp.float32),
        "bk": 0.1 * jax.random.normal(ks[3], (C,), jnp.float32),
        "wv": 0.1 * jax.random.normal(ks[4], (C, C), jnp.float32),
        "bv": 0.1 * jax.random.normal(ks[5], (C,), jnp.float32),
        "wo": 0.1 * jax.random.normal(ks[6], (C, C), jnp.float32),
        "bo": 0.1 * jax.random.normal(ks[7], (C,), jnp.float32),
        "gamma": jnp.ones((C,), jnp.float32),
        "beta": jnp.zeros((C,), jnp.float32),
    }

    x = jax.random.normal(ks[8], (T, B, C), jnp.float32)                    # (T, B, C)
    # key_padding_mask: (B, T), True == padded.  Batch 1 has its last 3 keys padded.
    mask = jnp.zeros((B, T), bool).at[1, T - 3:].set(True)

    ref = _reference(x, mask, params, H)

    # Exact-math path (f32 MXU operands, exact reciprocal): tight check of the kernel logic.
    out_f32 = conformer_attention_block(x, mask, params, H, compute_dtype=jnp.float32)
    out_f32 = jax.block_until_ready(out_f32)
    assert out_f32.shape == (T, B, C)
    err_f32 = float(jnp.max(jnp.abs(out_f32 - ref)))
    assert err_f32 < 2e-3, err_f32

    # Default path: bf16 MXU operands, f32 accumulation / f32 softmax sum (v6e/v7x recipe).
    out_bf16 = conformer_attention_block(x, mask, params, H)
    out_bf16 = jax.block_until_ready(out_bf16)
    assert out_bf16.shape == (T, B, C)
    err_bf16 = float(jnp.max(jnp.abs(out_bf16 - ref)))
    assert err_bf16 < 5e-2, err_bf16

    print("KERNEL_OK")
</pallas_src>

<mosaic_0001>
module attributes {stable_mosaic.version = 11 : i64} {
  func.func @_attention_block_kernel(%arg0: i32, %arg1: i32, %arg2: memref<1x1x8xf32, #tpu.memory_space<vmem>>, %arg3: memref<1x8x32xf32, #tpu.memory_space<vmem>>, %arg4: memref<32x96xf32, #tpu.memory_space<vmem>>, %arg5: memref<32x32xf32, #tpu.memory_space<vmem>>, %arg6: memref<1x96xf32, #tpu.memory_space<vmem>>, %arg7: memref<1x32xf32, #tpu.memory_space<vmem>>, %arg8: memref<1x32xf32, #tpu.memory_space<vmem>>, %arg9: memref<1x32xf32, #tpu.memory_space<vmem>>, %arg10: memref<1x8x32xf32, #tpu.memory_space<vmem>>, %arg11: memref<8x96xf32, #tpu.memory_space<vmem>>, %arg12: memref<8x32xf32, #tpu.memory_space<vmem>>) attributes {dimension_semantics = [#tpu.dimension_semantics<parallel>, #tpu.dimension_semantics<arbitrary>], iteration_bounds = array<i64: 2, 2>, scalar_prefetch = 0 : i64, scratch_operands = 2 : i64, tpu.core_type = #tpu.core_type<tc>, window_params = [{transform_indices = @transform_0, window_bounds = array<i64: 1, 1, 8>}, {transform_indices = @transform_1, window_bounds = array<i64: 1, 8, 32>}, {pipeline_mode = #tpu.pipeline_mode<synchronous>, transform_indices = @transform_2, window_bounds = array<i64: 32, 96>}, {pipeline_mode = #tpu.pipeline_mode<synchronous>, transform_indices = @transform_3, window_bounds = array<i64: 32, 32>}, {pipeline_mode = #tpu.pipeline_mode<synchronous>, transform_indices = @transform_4, window_bounds = array<i64: 1, 96>}, {pipeline_mode = #tpu.pipeline_mode<synchronous>, transform_indices = @transform_5, window_bounds = array<i64: 1, 32>}, {pipeline_mode = #tpu.pipeline_mode<synchronous>, transform_indices = @transform_6, window_bounds = array<i64: 1, 32>}, {pipeline_mode = #tpu.pipeline_mode<synchronous>, transform_indices = @transform_7, window_bounds = array<i64: 1, 32>}, {transform_indices = @transform_8, window_bounds = array<i64: 1, 8, 32>}]} {
    %c0_i32 = arith.constant 0 : i32
    %0 = arith.cmpi eq, %arg1, %c0_i32 : i32
    %1 = arith.extui %0 : i1 to i32
    %c0_i32_0 = arith.constant 0 : i32
    %2 = arith.cmpi ne, %1, %c0_i32_0 : i32
    scf.if %2 {
      %c0_i32_3 = arith.constant 0 : i32
      %c8_i32 = arith.constant 8 : i32
      %6 = arith.muli %c0_i32_3, %c8_i32 : i32
      %7 = tpu.assume_multiple %6, 8 : i32
      %c0 = arith.constant 0 : index
      %8 = arith.index_cast %7 : i32 to index
      %c0_4 = arith.constant 0 : index
      %9 = vector.load %arg3[%c0, %8, %c0_4] : memref<1x8x32xf32, #tpu.memory_space<vmem>>, vector<1x8x32xf32>
      %10 = vector.shape_cast %9 : vector<1x8x32xf32> to vector<8x32xf32>
      %cst = arith.constant dense<0.000000e+00> : vector<8xf32>
      %11 = vector.multi_reduction <add>, %10, %cst [1] : vector<8x32xf32> to vector<8xf32>
      %12 = vector.shape_cast %11 : vector<8xf32> to vector<8x1xf32>
      %cst_5 = arith.constant 3.200000e+01 : f32
      %13 = vector.broadcast %cst_5 : f32 to vector<8x1xf32>
      %14 = arith.divf %12, %13 : vector<8x1xf32>
      %15 = vector.broadcast %14 : vector<8x1xf32> to vector<8x32xf32>
      %16 = arith.subf %10, %15 : vector<8x32xf32>
      %17 = vector.broadcast %14 : vector<8x1xf32> to vector<8x32xf32>
      %18 = arith.subf %10, %17 : vector<8x32xf32>
      %19 = arith.mulf %16, %18 : vector<8x32xf32>
      %cst_6 = arith.constant dense<0.000000e+00> : vector<8xf32>
      %20 = vector.multi_reduction <add>, %19, %cst_6 [1] : vector<8x32xf32> to vector<8xf32>
      %21 = vector.shape_cast %20 : vector<8xf32> to vector<8x1xf32>
      %cst_7 = arith.constant 3.200000e+01 : f32
      %22 = vector.broadcast %cst_7 : f32 to vector<8x1xf32>
      %23 = arith.divf %21, %22 : vector<8x1xf32>
      %24 = vector.broadcast %14 : vector<8x1xf32> to vector<8x32xf32>
      %25 = arith.subf %10, %24 : vector<8x32xf32>
      %cst_8 = arith.constant 9.99999974E-6 : f32
      %26 = vector.broadcast %cst_8 : f32 to vector<8x1xf32>
      %27 = arith.addf %23, %26 : vector<8x1xf32>
      %28 = math.rsqrt %27 : vector<8x1xf32>
      %29 = vector.broadcast %28 : vector<8x1xf32> to vector<8x32xf32>
      %30 = arith.mulf %25, %29 : vector<8x32xf32>
      %c0_9 = arith.constant 0 : index
      %c0_10 = arith.constant 0 : index
      %31 = vector.load %arg8[%c0_9, %c0_10] : memref<1x32xf32, #tpu.memory_space<vmem>>, vector<1x32xf32>
      %32 = vector.broadcast %31 : vector<1x32xf32> to vector<8x32xf32>
      %33 = arith.mulf %30, %32 : vector<8x32xf32>
      %c0_11 = arith.constant 0 : index
      %c0_12 = arith.constant 0 : index
      %34 = vector.load %arg9[%c0_11, %c0_12] : memref<1x32xf32, #tpu.memory_space<vmem>>, vector<1x32xf32>
      %35 = vector.broadcast %34 : vector<1x32xf32> to vector<8x32xf32>
      %36 = arith.addf %33, %35 : vector<8x32xf32>
      %c0_13 = arith.constant 0 : index
      %c0_14 = arith.constant 0 : index
      %37 = vector.load %arg4[%c0_13, %c0_14] : memref<32x96xf32, #tpu.memory_space<vmem>>, vector<32x96xf32>
      %cst_15 = arith.constant dense<0.000000e+00> : vector<8x96xf32>
      %38 = tpu.matmul %36, %37, %cst_15 {dimension_numbers = #tpu.dot_dimension_numbers<[1], [0], [0], [1], [0, 0, 1, 1], [], []>} : vector<8x32xf32>, vector<32x96xf32>, vector<8x96xf32> -> vector<8x96xf32>
      %c0_16 = arith.constant 0 : index
      %c0_17 = arith.constant 0 : index
      %39 = vector.load %arg6[%c0_16, %c0_17] : memref<1x96xf32, #tpu.memory_space<vmem>>, vector<1x96xf32>
      %40 = vector.broadcast %39 : vector<1x96xf32> to vector<8x96xf32>
      %41 = arith.addf %38, %40 : vector<8x96xf32>
      %42 = arith.index_cast %7 : i32 to index
      %c0_18 = arith.constant 0 : index
      %43 = vector.load %arg11[%42, %c0_18] : memref<8x96xf32, #tpu.memory_space<vmem>>, vector<8x96xf32>
      tpu.vector_store %arg11[%42, %c0_18], %41 {strides = array<i32>} : memref<8x96xf32, #tpu.memory_space<vmem>>, vector<8x96xf32>,
      %c1_i32 = arith.constant 1 : i32
    } else {
    }
    %c0_i32_1 = arith.constant 0 : i32
    %3 = arith.cmpi sgt, %arg1, %c0_i32_1 : i32
    %4 = arith.extui %3 : i1 to i32
    %c0_i32_2 = arith.constant 0 : i32
    %5 = arith.cmpi ne, %4, %c0_i32_2 : i32
    scf.if %5 {
      %c1_i32 = arith.constant 1 : i32
      %6 = arith.subi %arg1, %c1_i32 : i32
      %c8_i32 = arith.constant 8 : i32
      %7 = arith.muli %6, %c8_i32 : i32
      %8 = tpu.assume_multiple %7, 8 : i32
      %c0 = arith.constant 0 : index
      %c0_3 = arith.constant 0 : index
      %c0_4 = arith.constant 0 : index
      %9 = vector.load %arg2[%c0, %c0_3, %c0_4] : memref<1x1x8xf32, #tpu.memory_space<vmem>>, vector<1x1x8xf32>
      %10 = vector.shape_cast %9 : vector<1x1x8xf32> to vector<1x8xf32>
      %11 = arith.index_cast %8 : i32 to index
      %c0_5 = arith.constant 0 : index
      %12 = vector.load %arg11[%11, %c0_5] : memref<8x96xf32, #tpu.memory_space<vmem>>, vector<8x8xf32>
      %c0_6 = arith.constant 0 : index
      %c32 = arith.constant 32 : index
      %13 = vector.load %arg11[%c0_6, %c32] : memref<8x96xf32, #tpu.memory_space<vmem>>, vector<8x8xf32>
      %c0_7 = arith.constant 0 : index
      %c64 = arith.constant 64 : index
      %14 = vector.load %arg11[%c0_7, %c64] : memref<8x96xf32, #tpu.memory_space<vmem>>, vector<8x8xf32>
      %cst = arith.constant dense<0.000000e+00> : vector<8x8xf32>
      %15 = tpu.matmul %12, %13, %cst {dimension_numbers = #tpu.dot_dimension_numbers<[1], [1], [0], [0], [0, 0, 1, 0], [], []>} : vector<8x8xf32>, vector<8x8xf32>, vector<8x8xf32> -> vector<8x8xf32>
      %16 = vector.broadcast %10 : vector<1x8xf32> to vector<8x8xf32>
      %17 = arith.addf %15, %16 : vector<8x8xf32>
      %cst_8 = arith.constant dense<0xFF800000> : vector<8xf32>
      %18 = vector.multi_reduction <maximumf>, %17, %cst_8 [1] : vector<8x8xf32> to vector<8xf32>
      %19 = vector.shape_cast %18 : vector<8xf32> to vector<8x1xf32>
      %20 = vector.broadcast %19 : vector<8x1xf32> to vector<8x8xf32>
      %21 = arith.subf %17, %20 : vector<8x8xf32>
      %22 = math.exp %21 : vector<8x8xf32>
      %cst_9 = arith.constant dense<0.000000e+00> : vector<8xf32>
      %23 = vector.multi_reduction <add>, %22, %cst_9 [1] : vector<8x8xf32> to vector<8xf32>
      %24 = vector.shape_cast %23 : vector<8xf32> to vector<8x1xf32>
      %25 = tpu.reciprocal %24 : vector<8x1xf32> -> vector<8x1xf32>
      %cst_10 = arith.constant dense<0.000000e+00> : vector<8x8xf32>
      %26 = tpu.matmul %22, %14, %cst_10 {dimension_numbers = #tpu.dot_dimension_numbers<[1], [0], [0], [1], [0, 0, 1, 1], [], []>} : vector<8x8xf32>, vector<8x8xf32>, vector<8x8xf32> -> vector<8x8xf32>
      %27 = vector.broadcast %25 : vector<8x1xf32> to vector<8x8xf32>
      %28 = arith.mulf %26, %27 : vector<8x8xf32>
      %c0_11 = arith.constant 0 : index
      %c0_12 = arith.constant 0 : index
      %29 = vector.load %arg12[%c0_11, %c0_12] : memref<8x32xf32, #tpu.memory_space<vmem>>, vector<8x8xf32>
      tpu.vector_store %arg12[%c0_11, %c0_12], %28 {strides = array<i32>} : memref<8x32xf32, #tpu.memory_space<vmem>>, vector<8x8xf32>,
      %30 = arith.index_cast %8 : i32 to index
      %c8 = arith.constant 8 : index
      %31 = vector.load %arg11[%30, %c8] : memref<8x96xf32, #tpu.memory_space<vmem>>, vector<8x8xf32>
      %c0_13 = arith.constant 0 : index
      %c40 = arith.constant 40 : index
      %32 = vector.load %arg11[%c0_13, %c40] : memref<8x96xf32, #tpu.memory_space<vmem>>, vector<8x8xf32>
      %c0_14 = arith.constant 0 : index
      %c72 = arith.constant 72 : index
      %33 = vector.load %arg11[%c0_14, %c72] : memref<8x96xf32, #tpu.memory_space<vmem>>, vector<8x8xf32>
      %cst_15 = arith.constant dense<0.000000e+00> : vector<8x8xf32>
      %34 = tpu.matmul %31, %32, %cst_15 {dimension_numbers = #tpu.dot_dimension_numbers<[1], [1], [0], [0], [0, 0, 1, 0], [], []>} : vector<8x8xf32>, vector<8x8xf32>, vector<8x8xf32> -> vector<8x8xf32>
      %35 = vector.broadcast %10 : vector<1x8xf32> to vector<8x8xf32>
      %36 = arith.addf %34, %35 : vector<8x8xf32>
      %cst_16 = arith.constant dense<0xFF800000> : vector<8xf32>
      %37 = vector.multi_reduction <maximumf>, %36, %cst_16 [1] : vector<8x8xf32> to vector<8xf32>
      %38 = vector.shape_cast %37 : vector<8xf32> to vector<8x1xf32>
      %39 = vector.broadcast %38 : vector<8x1xf32> to vector<8x8xf32>
      %40 = arith.subf %36, %39 : vector<8x8xf32>
      %41 = math.exp %40 : vector<8x8xf32>
      %cst_17 = arith.constant dense<0.000000e+00> : vector<8xf32>
      %42 = vector.multi_reduction <add>, %41, %cst_17 [1] : vector<8x8xf32> to vector<8xf32>
      %43 = vector.shape_cast %42 : vector<8xf32> to vector<8x1xf32>
      %44 = tpu.reciprocal %43 : vector<8x1xf32> -> vector<8x1xf32>
      %cst_18 = arith.constant dense<0.000000e+00> : vector<8x8xf32>
      %45 = tpu.matmul %41, %33, %cst_18 {dimension_numbers = #tpu.dot_dimension_numbers<[1], [0], [0], [1], [0, 0, 1, 1], [], []>} : vector<8x8xf32>, vector<8x8xf32>, vector<8x8xf32> -> vector<8x8xf32>
      %46 = vector.broadcast %44 : vector<8x1xf32> to vector<8x8xf32>
      %47 = arith.mulf %45, %46 : vector<8x8xf32>
      %c0_19 = arith.constant 0 : index
      %c8_20 = arith.constant 8 : index
      %48 = vector.load %arg12[%c0_19, %c8_20] : memref<8x32xf32, #tpu.memory_space<vmem>>, vector<8x8xf32>
      tpu.vector_store %arg12[%c0_19, %c8_20], %47 {strides = array<i32>} : memref<8x32xf32, #tpu.memory_space<vmem>>, vector<8x8xf32>,
      %49 = arith.index_cast %8 : i32 to index
      %c16 = arith.constant 16 : index
      %50 = vector.load %arg11[%49, %c16] : memref<8x96xf32, #tpu.memory_space<vmem>>, vector<8x8xf32>
      %c0_21 = arith.constant 0 : index
      %c48 = arith.constant 48 : index
      %51 = vector.load %arg11[%c0_21, %c48] : memref<8x96xf32, #tpu.memory_space<vmem>>, vector<8x8xf32>
      %c0_22 = arith.constant 0 : index
      %c80 = arith.constant 80 : index
      %52 = vector.load %arg11[%c0_22, %c80] : memref<8x96xf32, #tpu.memory_space<vmem>>, vector<8x8xf32>
      %cst_23 = arith.constant dense<0.000000e+00> : vector<8x8xf32>
      %53 = tpu.matmul %50, %51, %cst_23 {dimension_numbers = #tpu.dot_dimension_numbers<[1], [1], [0], [0], [0, 0, 1, 0], [], []>} : vector<8x8xf32>, vector<8x8xf32>, vector<8x8xf32> -> vector<8x8xf32>
      %54 = vector.broadcast %10 : vector<1x8xf32> to vector<8x8xf32>
      %55 = arith.addf %53, %54 : vector<8x8xf32>
      %cst_24 = arith.constant dense<0xFF800000> : vector<8xf32>
      %56 = vector.multi_reduction <maximumf>, %55, %cst_24 [1] : vector<8x8xf32> to vector<8xf32>
      %57 = vector.shape_cast %56 : vector<8xf32> to vector<8x1xf32>
      %58 = vector.broadcast %57 : vector<8x1xf32> to vector<8x8xf32>
      %59 = arith.subf %55, %58 : vector<8x8xf32>
      %60 = math.exp %59 : vector<8x8xf32>
      %cst_25 = arith.constant dense<0.000000e+00> : vector<8xf32>
      %61 = vector.multi_reduction <add>, %60, %cst_25 [1] : vector<8x8xf32> to vector<8xf32>
      %62 = vector.shape_cast %61 : vector<8xf32> to vector<8x1xf32>
      %63 = tpu.reciprocal %62 : vector<8x1xf32> -> vector<8x1xf32>
      %cst_26 = arith.constant dense<0.000000e+00> : vector<8x8xf32>
      %64 = tpu.matmul %60, %52, %cst_26 {dimension_numbers = #tpu.dot_dimension_numbers<[1], [0], [0], [1], [0, 0, 1, 1], [], []>} : vector<8x8xf32>, vector<8x8xf32>, vector<8x8xf32> -> vector<8x8xf32>
      %65 = vector.broadcast %63 : vector<8x1xf32> to vector<8x8xf32>
      %66 = arith.mulf %64, %65 : vector<8x8xf32>
      %c0_27 = arith.constant 0 : index
      %c16_28 = arith.constant 16 : index
      %67 = vector.load %arg12[%c0_27, %c16_28] : memref<8x32xf32, #tpu.memory_space<vmem>>, vector<8x8xf32>
      tpu.vector_store %arg12[%c0_27, %c16_28], %66 {strides = array<i32>} : memref<8x32xf32, #tpu.memory_space<vmem>>, vector<8x8xf32>,
      %68 = arith.index_cast %8 : i32 to index
      %c24 = arith.constant 24 : index
      %69 = vector.load %arg11[%68, %c24] : memref<8x96xf32, #tpu.memory_space<vmem>>, vector<8x8xf32>
      %c0_29 = arith.constant 0 : index
      %c56 = arith.constant 56 : index
      %70 = vector.load %arg11[%c0_29, %c56] : memref<8x96xf32, #tpu.memory_space<vmem>>, vector<8x8xf32>
      %c0_30 = arith.constant 0 : index
      %c88 = arith.constant 88 : index
      %71 = vector.load %arg11[%c0_30, %c88] : memref<8x96xf32, #tpu.memory_space<vmem>>, vector<8x8xf32>
      %cst_31 = arith.constant dense<0.000000e+00> : vector<8x8xf32>
      %72 = tpu.matmul %69, %70, %cst_31 {dimension_numbers = #tpu.dot_dimension_numbers<[1], [1], [0], [0], [0, 0, 1, 0], [], []>} : vector<8x8xf32>, vector<8x8xf32>, vector<8x8xf32> -> vector<8x8xf32>
      %73 = vector.broadcast %10 : vector<1x8xf32> to vector<8x8xf32>
      %74 = arith.addf %72, %73 : vector<8x8xf32>
      %cst_32 = arith.constant dense<0xFF800000> : vector<8xf32>
      %75 = vector.multi_reduction <maximumf>, %74, %cst_32 [1] : vector<8x8xf32> to vector<8xf32>
      %76 = vector.shape_cast %75 : vector<8xf32> to vector<8x1xf32>
      %77 = vector.broadcast %76 : vector<8x1xf32> to vector<8x8xf32>
      %78 = arith.subf %74, %77 : vector<8x8xf32>
      %79 = math.exp %78 : vector<8x8xf32>
      %cst_33 = arith.constant dense<0.000000e+00> : vector<8xf32>
      %80 = vector.multi_reduction <add>, %79, %cst_33 [1] : vector<8x8xf32> to vector<8xf32>
      %81 = vector.shape_cast %80 : vector<8xf32> to vector<8x1xf32>
      %82 = tpu.reciprocal %81 : vector<8x1xf32> -> vector<8x1xf32>
      %cst_34 = arith.constant dense<0.000000e+00> : vector<8x8xf32>
      %83 = tpu.matmul %79, %71, %cst_34 {dimension_numbers = #tpu.dot_dimension_numbers<[1], [0], [0], [1], [0, 0, 1, 1], [], []>} : vector<8x8xf32>, vector<8x8xf32>, vector<8x8xf32> -> vector<8x8xf32>
      %84 = vector.broadcast %82 : vector<8x1xf32> to vector<8x8xf32>
      %85 = arith.mulf %83, %84 : vector<8x8xf32>
      %c0_35 = arith.constant 0 : index
      %c24_36 = arith.constant 24 : index
      %86 = vector.load %arg12[%c0_35, %c24_36] : memref<8x32xf32, #tpu.memory_space<vmem>>, vector<8x8xf32>
      tpu.vector_store %arg12[%c0_35, %c24_36], %85 {strides = array<i32>} : memref<8x32xf32, #tpu.memory_space<vmem>>, vector<8x8xf32>,
      %c0_37 = arith.constant 0 : index
      %c0_38 = arith.constant 0 : index
      %87 = vector.load %arg12[%c0_37, %c0_38] : memref<8x32xf32, #tpu.memory_space<vmem>>, vector<8x32xf32>
      %c0_39 = arith.constant 0 : index
      %c0_40 = arith.constant 0 : index
      %88 = vector.load %arg5[%c0_39, %c0_40] : memref<32x32xf32, #tpu.memory_space<vmem>>, vector<32x32xf32>
      %cst_41 = arith.constant dense<0.000000e+00> : vector<8x32xf32>
      %89 = tpu.matmul %87, %88, %cst_41 {dimension_numbers = #tpu.dot_dimension_numbers<[1], [0], [0], [1], [0, 0, 1, 1], [], []>} : vector<8x32xf32>, vector<32x32xf32>, vector<8x32xf32> -> vector<8x32xf32>
      %c0_42 = arith.constant 0 : index
      %c0_43 = arith.constant 0 : index
      %90 = vector.load %arg7[%c0_42, %c0_43] : memref<1x32xf32, #tpu.memory_space<vmem>>, vector<1x32xf32>
      %91 = vector.broadcast %90 : vector<1x32xf32> to vector<8x32xf32>
      %92 = arith.addf %89, %91 : vector<8x32xf32>
      %c0_44 = arith.constant 0 : index
      %c0_45 = arith.constant 0 : index
      %c0_46 = arith.constant 0 : index
      %93 = vector.load %arg10[%c0_44, %c0_45, %c0_46] : memref<1x8x32xf32, #tpu.memory_space<vmem>>, vector<1x8x32xf32>
      %94 = vector.shape_cast %93 : vector<1x8x32xf32> to vector<8x32xf32>
      %95 = vector.shape_cast %92 : vector<8x32xf32> to vector<1x8x32xf32>
      tpu.vector_store %arg10[%c0_44, %c0_45, %c0_46], %95 {strides = array<i32>} : memref<1x8x32xf32, #tpu.memory_space<vmem>>, vector<1x8x32xf32>,
    } else {
    }
    return
  }
  func.func @transform_0(%arg0: i32, %arg1: i32) -> (i32, i32, i32) {
    %c0_i32 = arith.constant 0 : i32
    %c0_i32_0 = arith.constant 0 : i32
    %c0_i32_1 = arith.constant 0 : i32
    return %arg0, %c0_i32, %c0_i32_0 : i32, i32, i32
  }
  func.func @transform_1(%arg0: i32, %arg1: i32) -> (i32, i32, i32) {
    %c0_i32 = arith.constant 0 : i32
    %c0_i32_0 = arith.constant 0 : i32
    %c0_i32_1 = arith.constant 0 : i32
    return %arg0, %c0_i32, %c0_i32_0 : i32, i32, i32
  }
  func.func @transform_2(%arg0: i32, %arg1: i32) -> (i32, i32) {
    %c0_i32 = arith.constant 0 : i32
    %c0_i32_0 = arith.constant 0 : i32
    %c0_i32_1 = arith.constant 0 : i32
    return %c0_i32, %c0_i32_0 : i32, i32
  }
  func.func @transform_3(%arg0: i32, %arg1: i32) -> (i32, i32) {
    %c0_i32 = arith.constant 0 : i32
    %c0_i32_0 = arith.constant 0 : i32
    %c0_i32_1 = arith.constant 0 : i32
    return %c0_i32, %c0_i32_0 : i32, i32
  }
  func.func @transform_4(%arg0: i32, %arg1: i32) -> (i32, i32) {
    %c0_i32 = arith.constant 0 : i32
    %c0_i32_0 = arith.constant 0 : i32
    %c0_i32_1 = arith.constant 0 : i32
    return %c0_i32, %c0_i32_0 : i32, i32
  }
  func.func @transform_5(%arg0: i32, %arg1: i32) -> (i32, i32) {
    %c0_i32 = arith.constant 0 : i32
    %c0_i32_0 = arith.constant 0 : i32
    %c0_i32_1 = arith.constant 0 : i32
    return %c0_i32, %c0_i32_0 : i32, i32
  }
  func.func @transform_6(%arg0: i32, %arg1: i32) -> (i32, i32) {
    %c0_i32 = arith.constant 0 : i32
    %c0_i32_0 = arith.constant 0 : i32
    %c0_i32_1 = arith.constant 0 : i32
    return %c0_i32, %c0_i32_0 : i32, i32
  }
  func.func @transform_7(%arg0: i32, %arg1: i32) -> (i32, i32) {
    %c0_i32 = arith.constant 0 : i32
    %c0_i32_0 = arith.constant 0 : i32
    %c0_i32_1 = arith.constant 0 : i32
    return %c0_i32, %c0_i32_0 : i32, i32
  }
  func.func @transform_8(%arg0: i32, %arg1: i32) -> (i32, i32, i32) {
    %c1_i32 = arith.constant 1 : i32
    %0 = arith.subi %arg1, %c1_i32 : i32
    %c0_i32 = arith.constant 0 : i32
    %1 = arith.maxsi %0, %c0_i32 : i32
    %c0_i32_0 = arith.constant 0 : i32
    %c0_i32_1 = arith.constant 0 : i32
    return %arg0, %1, %c0_i32_0 : i32, i32, i32
  }
}

</mosaic_0001>

<llo_original>
// kernel: tpu_custom_call.1
$region0: #{tpu_custom_call.1}
  #allocation0 [shape = 'u32[]', space=smem, size = 0x4, offset = 0x4, fixed_abs, tag = 'smem constant byte address 0x4 - core index']
  #allocation1 [shape = 'u32[144,128]{1,0:T(1,128)}', space=vmem, size = 0x12000, scoped, tag = 'internal scratch']
  #allocation2 [shape = 'f32[8,96]{1,0:T(8,128)}', space=vmem, size = 0x1000, scoped, tag = 'scratch operand']
  #allocation3 [shape = 'f32[8,32]{1,0:T(8,128)}', space=vmem, size = 0x1000, scoped, tag = 'scratch operand']
  %s0 = inlined_call_operand.hbm [shape: f32[2,1,8], index: 0, kind: input, shape index: {}]
  %s1 = inlined_call_operand.hbm [shape: f32[2,8,32], index: 1, kind: input, shape index: {}]
  %s2 = inlined_call_operand.hbm [shape: f32[32,96], index: 2, kind: input, shape index: {}]
  %s3 = inlined_call_operand.hbm [shape: f32[32,32], index: 3, kind: input, shape index: {}]
  %s4 = inlined_call_operand.vmem [shape: f32[1,96], index: 4, kind: input, shape index: {}]
  %s5 = inlined_call_operand.vmem [shape: f32[1,32], index: 5, kind: input, shape index: {}]
  %s6 = inlined_call_operand.vmem [shape: f32[1,32], index: 6, kind: input, shape index: {}]
  %s7 = inlined_call_operand.vmem [shape: f32[1,32], index: 7, kind: input, shape index: {}]
  %s8 = inlined_call_operand.hbm [shape: f32[2,8,32], index: 8, kind: output, shape index: {}]
  %s9 = sld [smem:[#allocation0]]
  $region89: #{tpu_custom_call.1} parent=0
    _
  %s11 = ssub.s32 1, %s9
  %s12 = scalar_select 0, %s11, %s9
  $region1: #{tpu_custom_call.1} parent=0
    #allocation4 [shape = 'u8[1024]{0}', space=vmem, size = 0x400, scoped, tag = 'input window, operand 0']
    #allocation5 [shape = 's32[2]{0}', space=sflag, size = 0x8, scoped, tag = 'scoped memory for tpu_custom_call.1']
    #allocation6 [shape = 's32[2]{0}', space=sflag, size = 0x8, scoped, tag = 'scoped memory for tpu_custom_call.1']
    #allocation7 [shape = 'u8[8192]{0}', space=vmem, size = 0x2000, scoped, tag = 'input window, operand 1']
    #allocation8 [shape = 's32[2]{0}', space=sflag, size = 0x8, scoped, tag = 'scoped memory for tpu_custom_call.1']
    #allocation9 [shape = 'u8[16384]{0}', space=vmem, size = 0x4000, scoped, tag = 'input window, operand 2, single buffered']
    #allocation10 [shape = 'u8[16384]{0}', space=vmem, size = 0x4000, scoped, tag = 'input window, operand 3, single buffered']
    #allocation11 [shape = 's32[1]{0}', space=sflag, size = 0x4, scoped, tag = 'scoped memory for tpu_custom_call.1']
    #allocation12 [shape = 'u8[8192]{0}', space=vmem, size = 0x2000, scoped, tag = 'output window, operand 0']
    %13 = vsyncpa [#allocation5], 0
    %s14 = scalar_lea.sflag [#allocation5], 1
    %15 = vsyncpa %s14, 0
    %16 = vsyncpa [#allocation8], 0
    %s17 = scalar_lea.sflag [#allocation8], 1
    %18 = vsyncpa %s17, 0
    %19 = vsyncpa [#allocation11], 0
    %20 = vsyncpa [#allocation6], 0
    %s21 = scalar_lea.sflag [#allocation6], 1
    %22 = vsyncpa %s21, 0
    loop: start=0, step=1, limit=6
    $region2: #{tpu_custom_call.1} parent=1 // loop_pre_header
      _
    $region3: #{tpu_custom_call.1} parent=1 // loop_header
      %s24 = sphi 0, %s28
      %p25 = scmp.ge.s32.totalorder %s24, 6
      %s31 = sphi 0, %s43
      %s32 = sphi 0, %s39
      %s33 = sphi 0, %s31
      %s34 = sphi 0, %s32
      %s35 = sphi 0, %s33
      %s36 = sphi 0, %s34
      %s46 = sphi 0, %s48
      %s49 = sphi 0, %s46
      %s50 = sphi 0, %s49
      %s66 = sphi 0, %s50
      %s72 = sphi 0, %s74
      %s75 = sphi 0, %s72
      %s76 = sphi 0, %s75
      %s92 = sphi 0, %s76
      %s96 = sphi 0, %s96
      %s98 = sphi 0, %s96
      %s99 = sphi 0, %s98
      %s113 = sphi 0, %s99
      %s117 = sphi 0, %s117
      %s119 = sphi 0, %s117
      %s120 = sphi 0, %s119
      %s134 = sphi 0, %s120
      %s138 = sphi 0, %s138
      %s140 = sphi 0, %s138
      %s141 = sphi 0, %s140
      %s155 = sphi 0, %s141
      %s159 = sphi 0, %s159
      %s161 = sphi 0, %s159
      %s162 = sphi 0, %s161
      %s176 = sphi 0, %s162
      %s180 = sphi 0, %s180
      %s182 = sphi 0, %s180
      %s183 = sphi 0, %s182
      %s197 = sphi 0, %s183
      %s201 = sphi 0, %s201
      %s203 = sphi 0, %s201
      %s204 = sphi 0, %s203
      %s218 = sphi 0, %s204
      %s232 = sphi 0, %s234
      %s235 = sphi 0, %s232
      %s236 = sphi 0, %s235
      %s252 = sphi 0, %s236
    $region4: #{tpu_custom_call.1} parent=1 // loop_header_branch
      %27 = sbr.rel (%p25) target = $region8
    $region5: #{tpu_custom_call.1} parent=1 // loop_body
      %s29 = ssub.s32 %s24, 1
      %s30 = ssub.s32 %s24, 2
      %s37 = sadd.s32 1, %s32
      %p38 = scmp.ge.s32.totalorder %s37, 2
      %s39 = scalar_select %p38, 0, %s37
      %s40 = sadd.s32 1, %s31
      %s41 = scalar_select %p38, %s40, %s31
      %p42 = scmp.ge.s32.totalorder %s41, 2
      %s43 = scalar_select %p42, 0, %s41
      %s44 = ssub.s32 %s31, %s43
      %p45 = scmp.eq.s32.totalorder %s44, 0
      %s47 = sadd.s32 %s46, 1
      %s48 = scalar_select %p45, %s46, %s47
      %p51 = pneg %p45
      %p52 = scmp.eq.s32.totalorder %s24, 3
      %p53 = por %p51, %p52
      %p54 = scmp.ne.s32.totalorder %s46, %s49
      %p55 = scmp.eq.s32.totalorder %s24, 0
      %p56 = por %p54, %p55
      %p57 = scmp.ne.s32.totalorder %s46, %s49
      %p58 = scmp.eq.s32.totalorder %s29, 3
      %p59 = por %p57, %p58
      %p60 = scmp.ne.s32.totalorder %s49, %s50
      %p61 = scmp.eq.s32.totalorder %s29, 0
      %p62 = por %p60, %p61
      %p63 = scmp.ne.s32.totalorder %s49, %s50
      %p64 = scmp.eq.s32.totalorder %s30, 3
      %p65 = por %p63, %p64
      %p67 = scmp.ne.s32.totalorder %s50, %s66
      %p68 = scmp.eq.s32.totalorder %s30, 0
      %p69 = por %p67, %p68
      %s70 = ssub.s32 %s31, %s43
      %p71 = scmp.eq.s32.totalorder %s70, 0
      %s73 = sadd.s32 %s72, 1
      %s74 = scalar_select %p71, %s72, %s73
      %p77 = pneg %p71
      %p78 = scmp.eq.s32.totalorder %s24, 3
      %p79 = por %p77, %p78
      %p80 = scmp.ne.s32.totalorder %s72, %s75
      %p81 = scmp.eq.s32.totalorder %s24, 0
      %p82 = por %p80, %p81
      %p83 = scmp.ne.s32.totalorder %s72, %s75
      %p84 = scmp.eq.s32.totalorder %s29, 3
      %p85 = por %p83, %p84
      %p86 = scmp.ne.s32.totalorder %s75, %s76
      %p87 = scmp.eq.s32.totalorder %s29, 0
      %p88 = por %p86, %p87
      %p89 = scmp.ne.s32.totalorder %s75, %s76
      %p90 = scmp.eq.s32.totalorder %s30, 3
      %p91 = por %p89, %p90
      %p93 = scmp.ne.s32.totalorder %s76, %s92
      %p94 = scmp.eq.s32.totalorder %s30, 0
      %p95 = por %p93, %p94
      %s97 = sadd.s32 %s96, 1
      %p100 = scmp.eq.s32.totalorder %s24, 3
      %p101 = scmp.ne.s32.totalorder %s96, %s98
      %p102 = scmp.eq.s32.totalorder %s24, 0
      %p103 = por %p101, %p102
      %p104 = scmp.ne.s32.totalorder %s96, %s98
      %p105 = scmp.eq.s32.totalorder %s29, 3
      %p106 = por %p104, %p105
      %p107 = scmp.ne.s32.totalorder %s98, %s99
      %p108 = scmp.eq.s32.totalorder %s29, 0
      %p109 = por %p107, %p108
      %p110 = scmp.ne.s32.totalorder %s98, %s99
      %p111 = scmp.eq.s32.totalorder %s30, 3
      %p112 = por %p110, %p111
      %p114 = scmp.ne.s32.totalorder %s99, %s113
      %p115 = scmp.eq.s32.totalorder %s30, 0
      %p116 = por %p114, %p115
      %s118 = sadd.s32 %s117, 1
      %p121 = scmp.eq.s32.totalorder %s24, 3
      %p122 = scmp.ne.s32.totalorder %s117, %s119
      %p123 = scmp.eq.s32.totalorder %s24, 0
      %p124 = por %p122, %p123
      %p125 = scmp.ne.s32.totalorder %s117, %s119
      %p126 = scmp.eq.s32.totalorder %s29, 3
      %p127 = por %p125, %p126
      %p128 = scmp.ne.s32.totalorder %s119, %s120
      %p129 = scmp.eq.s32.totalorder %s29, 0
      %p130 = por %p128, %p129
      %p131 = scmp.ne.s32.totalorder %s119, %s120
      %p132 = scmp.eq.s32.totalorder %s30, 3
      %p133 = por %p131, %p132
      %p135 = scmp.ne.s32.totalorder %s120, %s134
      %p136 = scmp.eq.s32.totalorder %s30, 0
      %p137 = por %p135, %p136
      %s139 = sadd.s32 %s138, 1
      %p142 = scmp.eq.s32.totalorder %s24, 3
      %p143 = scmp.ne.s32.totalorder %s138, %s140
      %p144 = scmp.eq.s32.totalorder %s24, 0
      %p145 = por %p143, %p144
      %p146 = scmp.ne.s32.totalorder %s138, %s140
      %p147 = scmp.eq.s32.totalorder %s29, 3
      %p148 = por %p146, %p147
      %p149 = scmp.ne.s32.totalorder %s140, %s141
      %p150 = scmp.eq.s32.totalorder %s29, 0
      %p151 = por %p149, %p150
      %p152 = scmp.ne.s32.totalorder %s140, %s141
      %p153 = scmp.eq.s32.totalorder %s30, 3
      %p154 = por %p152, %p153
      %p156 = scmp.ne.s32.totalorder %s141, %s155
      %p157 = scmp.eq.s32.totalorder %s30, 0
      %p158 = por %p156, %p157
      %s160 = sadd.s32 %s159, 1
      %p163 = scmp.eq.s32.totalorder %s24, 3
      %p164 = scmp.ne.s32.totalorder %s159, %s161
      %p165 = scmp.eq.s32.totalorder %s24, 0
      %p166 = por %p164, %p165
      %p167 = scmp.ne.s32.totalorder %s159, %s161
      %p168 = scmp.eq.s32.totalorder %s29, 3
      %p169 = por %p167, %p168
      %p170 = scmp.ne.s32.totalorder %s161, %s162
      %p171 = scmp.eq.s32.totalorder %s29, 0
      %p172 = por %p170, %p171
      %p173 = scmp.ne.s32.totalorder %s161, %s162
      %p174 = scmp.eq.s32.totalorder %s30, 3
      %p175 = por %p173, %p174
      %p177 = scmp.ne.s32.totalorder %s162, %s176
      %p178 = scmp.eq.s32.totalorder %s30, 0
      %p179 = por %p177, %p178
      %s181 = sadd.s32 %s180, 1
      %p184 = scmp.eq.s32.totalorder %s24, 3
      %p185 = scmp.ne.s32.totalorder %s180, %s182
      %p186 = scmp.eq.s32.totalorder %s24, 0
      %p187 = por %p185, %p186
      %p188 = scmp.ne.s32.totalorder %s180, %s182
      %p189 = scmp.eq.s32.totalorder %s29, 3
      %p190 = por %p188, %p189
      %p191 = scmp.ne.s32.totalorder %s182, %s183
      %p192 = scmp.eq.s32.totalorder %s29, 0
      %p193 = por %p191, %p192
      %p194 = scmp.ne.s32.totalorder %s182, %s183
      %p195 = scmp.eq.s32.totalorder %s30, 3
      %p196 = por %p194, %p195
      %p198 = scmp.ne.s32.totalorder %s183, %s197
      %p199 = scmp.eq.s32.totalorder %s30, 0
      %p200 = por %p198, %p199
      %s202 = sadd.s32 %s201, 1
      %p205 = scmp.eq.s32.totalorder %s24, 3
      %p206 = scmp.ne.s32.totalorder %s201, %s203
      %p207 = scmp.eq.s32.totalorder %s24, 0
      %p208 = por %p206, %p207
      %p209 = scmp.ne.s32.totalorder %s201, %s203
      %p210 = scmp.eq.s32.totalorder %s29, 3
      %p211 = por %p209, %p210
      %p212 = scmp.ne.s32.totalorder %s203, %s204
      %p213 = scmp.eq.s32.totalorder %s29, 0
      %p214 = por %p212, %p213
      %p215 = scmp.ne.s32.totalorder %s203, %s204
      %p216 = scmp.eq.s32.totalorder %s30, 3
      %p217 = por %p215, %p216
      %p219 = scmp.ne.s32.totalorder %s204, %s218
      %p220 = scmp.eq.s32.totalorder %s30, 0
      %p221 = por %p219, %p220
      %s222 = ssub.s32 %s32, 1
      %p223 = scmp.gt.s32.totalorder %s222, 0
      %s224 = scalar_select %p223, %s222, 0
      %s225 = ssub.s32 %s39, 1
      %p226 = scmp.gt.s32.totalorder %s225, 0
      %s227 = scalar_select %p226, %s225, 0
      %s228 = ssub.s32 %s31, %s43
      %s229 = ssub.s32 %s224, %s227
      %s230 = sor.u32 %s228, %s229
      %p231 = scmp.eq.s32.totalorder %s230, 0
      %s233 = sadd.s32 %s232, 1
      %s234 = scalar_select %p231, %s232, %s233
      %p237 = pneg %p231
      %p238 = scmp.eq.s32.totalorder %s24, 3
      %p239 = por %p237, %p238
      %p240 = scmp.ne.s32.totalorder %s232, %s235
      %p241 = scmp.eq.s32.totalorder %s24, 0
      %p242 = por %p240, %p241
      %p243 = scmp.ne.s32.totalorder %s232, %s235
      %p244 = scmp.eq.s32.totalorder %s29, 3
      %p245 = por %p243, %p244
      %p246 = scmp.ne.s32.totalorder %s235, %s236
      %p247 = scmp.eq.s32.totalorder %s29, 0
      %p248 = por %p246, %p247
      %p249 = scmp.ne.s32.totalorder %s235, %s236
      %p250 = scmp.eq.s32.totalorder %s30, 3
      %p251 = por %p249, %p250
      %p253 = scmp.ne.s32.totalorder %s236, %s252
      %p254 = scmp.eq.s32.totalorder %s30, 0
      %p255 = por %p253, %p254
      %p256 = scmp.le.s32.totalorder 1, %s24
      %p257 = scmp.lt.s32.totalorder %s24, 5
      %p258 = pnand %p256, %p257
      %p259 = pneg %p258
      // Predicated region
      $region9: #{tpu_custom_call.1} parent=5 // pred_check
        _
      $region10: #{tpu_custom_call.1} parent=5 // pred_check_branch
        %261 = sbr.rel (%p258) target = $region12
      $region11: #{tpu_custom_call.1} parent=5 // pred_region
        %s262 = ssub.s32 %s24, 1
        // Predicated region
        $region13: #{tpu_custom_call.1} parent=11 // pred_check
          %p263 = pneg %p109
        $region14: #{tpu_custom_call.1} parent=11 // pred_check_branch
          %265 = sbr.rel (%p263) target = $region16
        $region15: #{tpu_custom_call.1} parent=11 // pred_region
          %s267 = ssub.s32 512, 512
          %268 = vsyncadd [#allocation8], %s267
          %s269 = sshll.u32 [#allocation9], 4
          %s270 = int_to_ptr.vmem [resolvable:$true] %s269
          %275 = dma.hbm_to_vmem [thread:$0]  %s2, 512, %s270, [#allocation8], 128, 128, 8
        $region16: #{tpu_custom_call.1} parent=11 // pred_fallthru
          _
        // Predicated region
        $region17: #{tpu_custom_call.1} parent=11 // pred_check
          %p276 = pneg %p130
        $region18: #{tpu_custom_call.1} parent=11 // pred_check_branch
          %278 = sbr.rel (%p276) target = $region20
        $region19: #{tpu_custom_call.1} parent=11 // pred_region
          %s280 = ssub.s32 512, 512
          %281 = vsyncadd [#allocation11], %s280
          %s282 = sshll.u32 [#allocation10], 4
          %s283 = int_to_ptr.vmem [resolvable:$true] %s282
          %288 = dma.hbm_to_vmem [thread:$0]  %s3, 512, %s283, [#allocation11], 128, 128, 8
        $region20: #{tpu_custom_call.1} parent=11 // pred_fallthru
          _
        // Predicated region
        $region21: #{tpu_custom_call.1} parent=11 // pred_check
          %p289 = pneg %p151
        $region22: #{tpu_custom_call.1} parent=11 // pred_check_branch
          %291 = sbr.rel (%p289) target = $region24
        $region23: #{tpu_custom_call.1} parent=11 // pred_region
          _
        $region24: #{tpu_custom_call.1} parent=11 // pred_fallthru
          _
        // Predicated region
        $region25: #{tpu_custom_call.1} parent=11 // pred_check
          %p292 = pneg %p172
        $region26: #{tpu_custom_call.1} parent=11 // pred_check_branch
          %294 = sbr.rel (%p292) target = $region28
        $region27: #{tpu_custom_call.1} parent=11 // pred_region
          _
        $region28: #{tpu_custom_call.1} parent=11 // pred_fallthru
          _
        // Predicated region
        $region29: #{tpu_custom_call.1} parent=11 // pred_check
          %p295 = pneg %p193
        $region30: #{tpu_custom_call.1} parent=11 // pred_check_branch
          %297 = sbr.rel (%p295) target = $region32
        $region31: #{tpu_custom_call.1} parent=11 // pred_region
          _
        $region32: #{tpu_custom_call.1} parent=11 // pred_fallthru
          _
        // Predicated region
        $region33: #{tpu_custom_call.1} parent=11 // pred_check
          %p298 = pneg %p214
        $region34: #{tpu_custom_call.1} parent=11 // pred_check_branch
          %300 = sbr.rel (%p298) target = $region36
        $region35: #{tpu_custom_call.1} parent=11 // pred_region
          _
        $region36: #{tpu_custom_call.1} parent=11 // pred_fallthru
          _
      $region12: #{tpu_custom_call.1} parent=5 // pred_fallthru
        _
      %p301 = scmp.lt.s32.totalorder %s24, 4
      // Predicated region
      $region37: #{tpu_custom_call.1} parent=5 // pred_check
        %p302 = pneg %p301
      $region38: #{tpu_custom_call.1} parent=5 // pred_check_branch
        %304 = sbr.rel (%p302) target = $region40
      $region39: #{tpu_custom_call.1} parent=5 // pred_region
        // Predicated region
        $region41: #{tpu_custom_call.1} parent=39 // pred_check
          %p305 = pneg %p56
        $region42: #{tpu_custom_call.1} parent=39 // pred_check_branch
          %307 = sbr.rel (%p305) target = $region44
        $region43: #{tpu_custom_call.1} parent=39 // pred_region
          %s308 = sand.u32 %s46, 1
          %s309 = scalar_lea.sflag [#allocation5], %s308
          %s310 = sand.u32 %s46, 1
          %s311 = scalar_lea.vmem [#allocation4], %s310
          %s313 = ssub.s32 16, 16
          %314 = vsyncadd %s309, %s313
          %s315 = smul.addr %s31, 16
          %s316 = scalar_lea.hbm %s0, %s315
          %s318 = sshll.u32 %s311, 4
          %s319 = int_to_ptr.vmem [resolvable:$true] %s318
          %321 = dma.hbm_to_vmem [thread:$0]  %s316, 16, %s319, %s309
        $region44: #{tpu_custom_call.1} parent=39 // pred_fallthru
          _
        // Predicated region
        $region45: #{tpu_custom_call.1} parent=39 // pred_check
          %p322 = pneg %p82
        $region46: #{tpu_custom_call.1} parent=39 // pred_check_branch
          %324 = sbr.rel (%p322) target = $region48
        $region47: #{tpu_custom_call.1} parent=39 // pred_region
          %s325 = sand.u32 %s24, 1
          %s326 = scalar_lea.sflag [#allocation8], %s325
          %s327 = sand.u32 %s72, 1
          %s328 = smul.addr %s327, 8
          %s329 = scalar_lea.vmem [#allocation7], %s328
          %s331 = ssub.s32 128, 128
          %332 = vsyncadd %s326, %s331
          %s333 = smul.addr %s31, 128
          %s334 = scalar_lea.hbm %s1, %s333
          %s336 = sshll.u32 %s329, 4
          %s337 = int_to_ptr.vmem [resolvable:$true] %s336
          %339 = dma.hbm_to_vmem [thread:$0]  %s334, 128, %s337, %s326
        $region48: #{tpu_custom_call.1} parent=39 // pred_fallthru
          _
      $region40: #{tpu_custom_call.1} parent=5 // pred_fallthru
        _
      %p340 = scmp.le.s32.totalorder 1, %s24
      %p341 = scmp.lt.s32.totalorder %s24, 5
      %p342 = pnand %p340, %p341
      %p343 = pneg %p342
      // Predicated region
      $region49: #{tpu_custom_call.1} parent=5 // pred_check
        _
      $region50: #{tpu_custom_call.1} parent=5 // pred_check_branch
        %345 = sbr.rel (%p342) target = $region52
      $region51: #{tpu_custom_call.1} parent=5 // pred_region
        %s346 = ssub.s32 %s24, 1
        %s347 = sand.u32 %s49, 1
        %s348 = scalar_lea.sflag [#allocation5], %s347
        %s349 = sand.u32 %s49, 1
        %s350 = scalar_lea.vmem [#allocation4], %s349
        // Predicated region
        $region53: #{tpu_custom_call.1} parent=51 // pred_check
          %p351 = pneg %p62
        $region54: #{tpu_custom_call.1} parent=51 // pred_check_branch
          %353 = sbr.rel (%p351) target = $region56
        $region55: #{tpu_custom_call.1} parent=51 // pred_region
          %354 = dma.done %s348, 16
        $region56: #{tpu_custom_call.1} parent=51 // pred_fallthru
          _
        %s355 = sand.u32 %s29, 1
        %s356 = scalar_lea.sflag [#allocation8], %s355
        %s357 = sand.u32 %s75, 1
        %s358 = smul.addr %s357, 8
        %s359 = scalar_lea.vmem [#allocation7], %s358
        // Predicated region
        $region57: #{tpu_custom_call.1} parent=51 // pred_check
          %p360 = pneg %p88
        $region58: #{tpu_custom_call.1} parent=51 // pred_check_branch
          %362 = sbr.rel (%p360) target = $region60
        $region59: #{tpu_custom_call.1} parent=51 // pred_region
          %363 = dma.done %s356, 128
        $region60: #{tpu_custom_call.1} parent=51 // pred_fallthru
          _
        // Predicated region
        $region61: #{tpu_custom_call.1} parent=51 // pred_check
          %p364 = pneg %p109
        $region62: #{tpu_custom_call.1} parent=51 // pred_check_branch
          %366 = sbr.rel (%p364) target = $region64
        $region63: #{tpu_custom_call.1} parent=51 // pred_region
          %367 = dma.done [#allocation8], 512
        $region64: #{tpu_custom_call.1} parent=51 // pred_fallthru
          _
        // Predicated region
        $region65: #{tpu_custom_call.1} parent=51 // pred_check
          %p368 = pneg %p130
        $region66: #{tpu_custom_call.1} parent=51 // pred_check_branch
          %370 = sbr.rel (%p368) target = $region68
        $region67: #{tpu_custom_call.1} parent=51 // pred_region
          %371 = dma.done [#allocation11], 512
        $region68: #{tpu_custom_call.1} parent=51 // pred_fallthru
          _
        %s372 = sand.u32 %s49, 1
        %s373 = scalar_lea.sflag [#allocation5], %s372
        %s374 = sand.u32 %s49, 1
        %s375 = scalar_lea.vmem [#allocation4], %s374
        %p376 = pneg %p62
        %p377 = pneg %p59
        %s378 = sand.u32 %s29, 1
        %s379 = scalar_lea.sflag [#allocation8], %s378
        %s380 = sand.u32 %s75, 1
        %s381 = smul.addr %s380, 8
        %s382 = scalar_lea.vmem [#allocation7], %s381
        %p383 = pneg %p88
        %p384 = pneg %p85
        %p385 = pneg %p109
        %p386 = pneg %p106
        %p387 = pneg %p130
        %p388 = pneg %p127
        %p389 = pneg %p151
        %p390 = pneg %p148
        %p391 = pneg %p172
        %p392 = pneg %p169
        %p393 = pneg %p193
        %p394 = pneg %p190
        %p395 = pneg %p214
        %p396 = pneg %p211
        %p397 = pneg %p248
        %p398 = pneg %p245
        %s399 = sand.u32 %s235, 1
        %s400 = scalar_lea.sflag [#allocation6], %s399
        %s401 = sand.u32 %s235, 1
        %s402 = smul.addr %s401, 8
        %s403 = scalar_lea.vmem [#allocation12], %s402
        %s404 = ssub.s32 %s34, 1
        %p405 = scmp.gt.s32.totalorder %s404, 0
        %s406 = scalar_select %p405, %s404, 0
        %p407 = scmp.eq.s32.totalorder %s34, 0
        // Predicated region
        $region69: #{tpu_custom_call.1} parent=51 // pred_check
          %p408 = pneg %p407
        $region70: #{tpu_custom_call.1} parent=51 // pred_check_branch
          %410 = sbr.rel (%p408) target = $region72
        $region71: #{tpu_custom_call.1} parent=51 // pred_region
          %v411 = vld [vmem:[%s359] sm:$0xff]
          %vm412 = vcmask 261120
          %v413 = vsel %vm412, %v411, 0.0
          %414 = vadd.xlane.f32.xlu0 %v413
          %v415 = vpop.xlane.xlu0 %414
          %v416 = vrcp.pop 32.0
          %v417 = vmul.f32 %v415, %v416
          %v418 = vsub.f32 %v411, %v417
          %v419 = vmul.f32 %v418, %v418
          %v420 = vsel %vm412, %v419, 0.0
          %421 = vadd.xlane.f32.xlu0 %v420
          %v422 = vpop.xlane.xlu0 %421
          %v423 = vmul.f32 %v422, %v416
          %v424 = vadd.f32 %v423, 1e-05
          %v425 = vrsqrt.pop %v424
          %v426 = vmul.f32 %v418, %v425
          %v427 = vld [vmem:[%s6] sm:$0x1]
          %v429 = vlaneseq
          %v430 = vshrl.u32 %v429, 7
          %v431 = vsub.s32 0, %v430
          %v432 = vrot.slane %v427, %v431
          %v434 = vmul.f32 %v426, %v432
          %v435 = vld [vmem:[%s7] sm:$0x1]
          %v437 = vlaneseq
          %v438 = vshrl.u32 %v437, 7
          %v439 = vsub.s32 0, %v438
          %v440 = vrot.slane %v435, %v439
          %v442 = vadd.f32 %v434, %v440
          %v443 = vld [vmem:[#allocation9] sm:$0xff]
          %v444 = vld [vmem:[#allocation9 + $0x8] sm:$0xff]
          %v445 = vld [vmem:[#allocation9 + $0x10] sm:$0xff]
          %v446 = vld [vmem:[#allocation9 + $0x18] sm:$0xff]
          %v447 = vld [vmem:[%s4] sm:$0x1]
          %v449 = vlaneseq
          %v450 = vshrl.u32 %v449, 7
          %v451 = vsub.s32 0, %v450
          %v452 = vrot.slane %v447, %v451
          %v455 = vsel %vm412, %v442, 0
          %457 = vmatprep.subr.mxu0 0.0
          %458 = vmatpush1.msra.mxu0 %v443
          %459 = vmatprep.subr.mxu0 0.0
          %460 = vmatpush1.msra.mxu0 %v444
          %461 = vmatprep.subr.mxu0 0.0
          %462 = vmatpush1.msra.mxu0 %v445
          %463 = vmatprep.subr.mxu0 0.0
          %464 = vmatpush1.msra.mxu0 %v446
          %465 = vmatprep.subr.mxu0 0.0
          %466 = vmatpush1.msra.mxu0 0.0
          %467 = vmatprep.subr.mxu0 0.0
          %468 = vmatpush1.msra.mxu0 0.0
          %469 = vmatprep.subr.mxu0 0.0
          %470 = vmatpush1.msra.mxu0 0.0
          %471 = vmatprep.subr.mxu0 0.0
          %472 = vmatpush1.msra.mxu0 0.0
          %473 = vmatprep.subr.mxu0 0.0
          %474 = vmatpush1.msra.mxu0 0.0
          %475 = vmatprep.subr.mxu0 0.0
          %476 = vmatpush1.msra.mxu0 0.0
          %477 = vmatprep.subr.mxu0 0.0
          %478 = vmatpush1.msra.mxu0 0.0
          %479 = vmatprep.subr.mxu0 0.0
          %480 = vmatpush1.msra.mxu0 0.0
          %481 = vmatprep.subr.mxu0 0.0
          %482 = vmatpush1.msra.mxu0 0.0
          %483 = vmatprep.subr.mxu0 0.0
          %484 = vmatpush1.msra.mxu0 0.0
          %485 = vmatprep.subr.mxu0 0.0
          %486 = vmatpush1.msra.mxu0 0.0
          %487 = vmatprep.subr.mxu0 0.0
          %488 = vmatpush1.msra.mxu0 0.0
          %489 = vmatprep.subr.mxu0 0.0
          %490 = vmatpush1.msra.mxu0 0.0
          %491 = vmatprep.subr.mxu0 0.0
          %492 = vmatpush1.msra.mxu0 0.0
          %493 = vmatprep.subr.mxu0 0.0
          %494 = vmatpush1.msra.mxu0 0.0
          %495 = vmatprep.subr.mxu0 0.0
          %496 = vmatpush1.msra.mxu0 0.0
          %497 = vmatprep.subr.mxu0 0.0
          %498 = vmatpush1.msra.mxu0 0.0
          %499 = vmatprep.subr.mxu0 0.0
          %500 = vmatpush1.msra.mxu0 0.0
          %501 = vmatprep.subr.mxu0 0.0
          %502 = vmatpush1.msra.mxu0 0.0
          %503 = vmatprep.subr.mxu0 0.0
          %504 = vmatpush1.msra.mxu0 0.0
          %505 = vmatprep.subr.mxu0 0.0
          %506 = vmatpush1.msra.mxu0 0.0
          %507 = vmatprep.subr.mxu0 0.0
          %508 = vmatpush1.msra.mxu0 0.0
          %509 = vmatprep.subr.mxu0 0.0
          %510 = vmatpush1.msra.mxu0 0.0
          %511 = vmatprep.subr.mxu0 0.0
          %512 = vmatpush1.msra.mxu0 0.0
          %513 = vmatprep.subr.mxu0 0.0
          %514 = vmatpush1.msra.mxu0 0.0
          %515 = vmatprep.subr.mxu0 0.0
          %516 = vmatpush1.msra.mxu0 0.0
          %517 = vmatprep.subr.mxu0 0.0
          %518 = vmatpush1.msra.mxu0 0.0
          %519 = vmatprep.subr.mxu0 0.0
          %520 = vmatpush1.msra.mxu0 0.0
          %521 = vmatprep.mubr.f32.mxu0 0.0
          %522 = vmatmul.mubr.f32.gmra.mrb[0].mxu0 %v455
          %v523 = vpop.f32.mrb[0].mxu0
          %v524 = vadd.f32 %v452, %v523
          %v525 = vpop.f32.mrb[0].mxu0
          %526 = vdwg.mxu0
          %vm527 = vcmask 785408
          %528 = vst.msk [vmem:[#allocation2] sm:$0xff] %vm527, %v524
        $region72: #{tpu_custom_call.1} parent=51 // pred_fallthru
          _
        %p529 = scmp.gt.s32.totalorder %s34, 0
        // Predicated region
        $region73: #{tpu_custom_call.1} parent=51 // pred_check
          %p530 = pneg %p529
        $region74: #{tpu_custom_call.1} parent=51 // pred_check_branch
          %532 = sbr.rel (%p530) target = $region76
        $region75: #{tpu_custom_call.1} parent=51 // pred_region
          %s533 = ssub.s32 %s34, 1
          %s534 = smul.u32 %s533, 8
          %v535 = vld [vmem:[%s350] sm:$0x1]
          %s536 = scalar_lea.vmem [#allocation2], %s534
          %v537 = vld [vmem:[%s536] sm:$0xff]
          %v538 = vld [vmem:[#allocation2] sm:$0xff]
          %v540 = vlaneseq
          %v541 = vshrl.u32 %v540, 7
          %v542 = vsub.s32 0, %v541
          %v543 = vrot.slane %v535, %v542
          %546 = vrot.lane.b32.xlu0 %v538, 96
          %v547 = vpop.permute.xlu0 %546
          %vm548 = vcmask 64512
          %v550 = vsel %vm548, %v537, 0
          %v552 = vsel %vm548, %v547, 0
          %554 = vmatprep.subr.mxu0 0.0
          %555 = vmatpush1.xpose.msra.mxu0 %v552
          %556 = vmatprep.subr.mxu0 0.0
          %557 = vmatpush1.xpose.msra.mxu0 0.0
          %558 = vmatprep.subr.mxu0 0.0
          %559 = vmatpush1.xpose.msra.mxu0 0.0
          %560 = vmatprep.subr.mxu0 0.0
          %561 = vmatpush1.xpose.msra.mxu0 0.0
          %562 = vmatprep.subr.mxu0 0.0
          %563 = vmatpush1.xpose.msra.mxu0 0.0
          %564 = vmatprep.subr.mxu0 0.0
          %565 = vmatpush1.xpose.msra.mxu0 0.0
          %566 = vmatprep.subr.mxu0 0.0
          %567 = vmatpush1.xpose.msra.mxu0 0.0
          %568 = vmatprep.subr.mxu0 0.0
          %569 = vmatpush1.xpose.msra.mxu0 0.0
          %570 = vmatprep.subr.mxu0 0.0
          %571 = vmatpush1.xpose.msra.mxu0 0.0
          %572 = vmatprep.subr.mxu0 0.0
          %573 = vmatpush1.xpose.msra.mxu0 0.0
          %574 = vmatprep.subr.mxu0 0.0
          %575 = vmatpush1.xpose.msra.mxu0 0.0
          %576 = vmatprep.subr.mxu0 0.0
          %577 = vmatpush1.xpose.msra.mxu0 0.0
          %578 = vmatprep.subr.mxu0 0.0
          %579 = vmatpush1.xpose.msra.mxu0 0.0
          %580 = vmatprep.subr.mxu0 0.0
          %581 = vmatpush1.xpose.msra.mxu0 0.0
          %582 = vmatprep.subr.mxu0 0.0
          %583 = vmatpush1.xpose.msra.mxu0 0.0
          %584 = vmatprep.subr.mxu0 0.0
          %585 = vmatpush1.xpose.msra.mxu0 0.0
          %586 = vmatprep.subr.mxu0 0.0
          %587 = vmatpush1.xpose.msra.mxu0 0.0
          %588 = vmatprep.subr.mxu0 0.0
          %589 = vmatpush1.xpose.msra.mxu0 0.0
          %590 = vmatprep.subr.mxu0 0.0
          %591 = vmatpush1.xpose.msra.mxu0 0.0
          %592 = vmatprep.subr.mxu0 0.0
          %593 = vmatpush1.xpose.msra.mxu0 0.0
          %594 = vmatprep.subr.mxu0 0.0
          %595 = vmatpush1.xpose.msra.mxu0 0.0
          %596 = vmatprep.subr.mxu0 0.0
          %597 = vmatpush1.xpose.msra.mxu0 0.0
          %598 = vmatprep.subr.mxu0 0.0
          %599 = vmatpush1.xpose.msra.mxu0 0.0
          %600 = vmatprep.subr.mxu0 0.0
          %601 = vmatpush1.xpose.msra.mxu0 0.0
          %602 = vmatprep.subr.mxu0 0.0
          %603 = vmatpush1.xpose.msra.mxu0 0.0
          %604 = vmatprep.subr.mxu0 0.0
          %605 = vmatpush1.xpose.msra.mxu0 0.0
          %606 = vmatprep.subr.mxu0 0.0
          %607 = vmatpush1.xpose.msra.mxu0 0.0
          %608 = vmatprep.subr.mxu0 0.0
          %609 = vmatpush1.xpose.msra.mxu0 0.0
          %610 = vmatprep.subr.mxu0 0.0
          %611 = vmatpush1.xpose.msra.mxu0 0.0
          %612 = vmatprep.subr.mxu0 0.0
          %613 = vmatpush1.xpose.msra.mxu0 0.0
          %614 = vmatprep.subr.mxu0 0.0
          %615 = vmatpush1.xpose.msra.mxu0 0.0
          %616 = vmatprep.subr.mxu0 0.0
          %617 = vmatpush1.xpose.msra.mxu0 0.0
          %618 = vmatprep.mubr.f32.mxu0 0.0
          %619 = vmatmul.mubr.f32.gmra.mrb[0].mxu0 %v550
          %v620 = vpop.f32.mrb[0].mxu0
          %v621 = vadd.f32 %v543, %v620
          %v622 = vpop.f32.mrb[0].mxu0
          %623 = vdwg.mxu0
          %v624 = vsel %vm548, %v621, -inf
          %625 = vmax.xlane.f32.xlu0 %v624
          %v626 = vpop.xlane.xlu0 %625
          %v627 = vsub.f32 %v621, %v626
          %v628 = vmul.f32 %v627, 1.442695
          %v629 = vpow.pop %v628
          %v630 = vsel %vm548, %v629, 0.0
          %631 = vadd.xlane.f32.xlu0 %v630
          %v632 = vpop.xlane.xlu0 %631
          %v633 = vrcp.pop %v632
          %634 = vrot.lane.b32.xlu0 %v538, 64
          %v635 = vpop.permute.xlu0 %634
          %v638 = vsel %vm548, %v629, 0
          %640 = vmatprep.subr.mxu0 0.0
          %641 = vmatpush1.msra.mxu0 %v635
          %642 = vmatprep.subr.mxu0 0.0
          %643 = vmatpush1.msra.mxu0 0.0
          %644 = vmatprep.subr.mxu0 0.0
          %645 = vmatpush1.msra.mxu0 0.0
          %646 = vmatprep.subr.mxu0 0.0
          %647 = vmatpush1.msra.mxu0 0.0
          %648 = vmatprep.subr.mxu0 0.0
          %649 = vmatpush1.msra.mxu0 0.0
          %650 = vmatprep.subr.mxu0 0.0
          %651 = vmatpush1.msra.mxu0 0.0
          %652 = vmatprep.subr.mxu0 0.0
          %653 = vmatpush1.msra.mxu0 0.0
          %654 = vmatprep.subr.mxu0 0.0
          %655 = vmatpush1.msra.mxu0 0.0
          %656 = vmatprep.subr.mxu0 0.0
          %657 = vmatpush1.msra.mxu0 0.0
          %658 = vmatprep.subr.mxu0 0.0
          %659 = vmatpush1.msra.mxu0 0.0
          %660 = vmatprep.subr.mxu0 0.0
          %661 = vmatpush1.msra.mxu0 0.0
          %662 = vmatprep.subr.mxu0 0.0
          %663 = vmatpush1.msra.mxu0 0.0
          %664 = vmatprep.subr.mxu0 0.0
          %665 = vmatpush1.msra.mxu0 0.0
          %666 = vmatprep.subr.mxu0 0.0
          %667 = vmatpush1.msra.mxu0 0.0
          %668 = vmatprep.subr.mxu0 0.0
          %669 = vmatpush1.msra.mxu0 0.0
          %670 = vmatprep.subr.mxu0 0.0
          %671 = vmatpush1.msra.mxu0 0.0
          %672 = vmatprep.subr.mxu0 0.0
          %673 = vmatpush1.msra.mxu0 0.0
          %674 = vmatprep.subr.mxu0 0.0
          %675 = vmatpush1.msra.mxu0 0.0
          %676 = vmatprep.subr.mxu0 0.0
          %677 = vmatpush1.msra.mxu0 0.0
          %678 = vmatprep.subr.mxu0 0.0
          %679 = vmatpush1.msra.mxu0 0.0
          %680 = vmatprep.subr.mxu0 0.0
          %681 = vmatpush1.msra.mxu0 0.0
          %682 = vmatprep.subr.mxu0 0.0
          %683 = vmatpush1.msra.mxu0 0.0
          %684 = vmatprep.subr.mxu0 0.0
          %685 = vmatpush1.msra.mxu0 0.0
          %686 = vmatprep.subr.mxu0 0.0
          %687 = vmatpush1.msra.mxu0 0.0
          %688 = vmatprep.subr.mxu0 0.0
          %689 = vmatpush1.msra.mxu0 0.0
          %690 = vmatprep.subr.mxu0 0.0
          %691 = vmatpush1.msra.mxu0 0.0
          %692 = vmatprep.subr.mxu0 0.0
          %693 = vmatpush1.msra.mxu0 0.0
          %694 = vmatprep.subr.mxu0 0.0
          %695 = vmatpush1.msra.mxu0 0.0
          %696 = vmatprep.subr.mxu0 0.0
          %697 = vmatpush1.msra.mxu0 0.0
          %698 = vmatprep.subr.mxu0 0.0
          %699 = vmatpush1.msra.mxu0 0.0
          %700 = vmatprep.subr.mxu0 0.0
          %701 = vmatpush1.msra.mxu0 0.0
          %702 = vmatprep.subr.mxu0 0.0
          %703 = vmatpush1.msra.mxu0 0.0
          %704 = vmatprep.mubr.f32.mxu0 0.0
          %705 = vmatmul.mubr.f32.gmra.mrb[0].mxu0 %v638
          %v706 = vpop.f32.mrb[0].mxu0
          %v707 = vadd.f32 0.0, %v706
          %v708 = vpop.f32.mrb[0].mxu0
          %709 = vdwg.mxu0
          %v710 = vmul.f32 %v707, %v633
          %711 = vst.msk [vmem:[#allocation3] sm:$0xff] %vm548, %v710
          %v712 = vld [vmem:[%s536] sm:$0xff]
          %v713 = vld [vmem:[#allocation2] sm:$0xff]
          %715 = vrot.lane.b32.xlu0 %v712, 120
          %v716 = vpop.permute.xlu0 %715
          %718 = vrot.lane.b32.xlu0 %v713, 88
          %v719 = vpop.permute.xlu0 %718
          %v720 = vsel %vm548, %v716, 0
          %v722 = vsel %vm548, %v719, 0
          %724 = vmatprep.subr.mxu0 0.0
          %725 = vmatpush1.xpose.msra.mxu0 %v722
          %726 = vmatprep.subr.mxu0 0.0
          %727 = vmatpush1.xpose.msra.mxu0 0.0
          %728 = vmatprep.subr.mxu0 0.0
          %729 = vmatpush1.xpose.msra.mxu0 0.0
          %730 = vmatprep.subr.mxu0 0.0
          %731 = vmatpush1.xpose.msra.mxu0 0.0
          %732 = vmatprep.subr.mxu0 0.0
          %733 = vmatpush1.xpose.msra.mxu0 0.0
          %734 = vmatprep.subr.mxu0 0.0
          %735 = vmatpush1.xpose.msra.mxu0 0.0
          %736 = vmatprep.subr.mxu0 0.0
          %737 = vmatpush1.xpose.msra.mxu0 0.0
          %738 = vmatprep.subr.mxu0 0.0
          %739 = vmatpush1.xpose.msra.mxu0 0.0
          %740 = vmatprep.subr.mxu0 0.0
          %741 = vmatpush1.xpose.msra.mxu0 0.0
          %742 = vmatprep.subr.mxu0 0.0
          %743 = vmatpush1.xpose.msra.mxu0 0.0
          %744 = vmatprep.subr.mxu0 0.0
          %745 = vmatpush1.xpose.msra.mxu0 0.0
          %746 = vmatprep.subr.mxu0 0.0
          %747 = vmatpush1.xpose.msra.mxu0 0.0
          %748 = vmatprep.subr.mxu0 0.0
          %749 = vmatpush1.xpose.msra.mxu0 0.0
          %750 = vmatprep.subr.mxu0 0.0
          %751 = vmatpush1.xpose.msra.mxu0 0.0
          %752 = vmatprep.subr.mxu0 0.0
          %753 = vmatpush1.xpose.msra.mxu0 0.0
          %754 = vmatprep.subr.mxu0 0.0
          %755 = vmatpush1.xpose.msra.mxu0 0.0
          %756 = vmatprep.subr.mxu0 0.0
          %757 = vmatpush1.xpose.msra.mxu0 0.0
          %758 = vmatprep.subr.mxu0 0.0
          %759 = vmatpush1.xpose.msra.mxu0 0.0
          %760 = vmatprep.subr.mxu0 0.0
          %761 = vmatpush1.xpose.msra.mxu0 0.0
          %762 = vmatprep.subr.mxu0 0.0
          %763 = vmatpush1.xpose.msra.mxu0 0.0
          %764 = vmatprep.subr.mxu0 0.0
          %765 = vmatpush1.xpose.msra.mxu0 0.0
          %766 = vmatprep.subr.mxu0 0.0
          %767 = vmatpush1.xpose.msra.mxu0 0.0
          %768 = vmatprep.subr.mxu0 0.0
          %769 = vmatpush1.xpose.msra.mxu0 0.0
          %770 = vmatprep.subr.mxu0 0.0
          %771 = vmatpush1.xpose.msra.mxu0 0.0
          %772 = vmatprep.subr.mxu0 0.0
          %773 = vmatpush1.xpose.msra.mxu0 0.0
          %774 = vmatprep.subr.mxu0 0.0
          %775 = vmatpush1.xpose.msra.mxu0 0.0
          %776 = vmatprep.subr.mxu0 0.0
          %777 = vmatpush1.xpose.msra.mxu0 0.0
          %778 = vmatprep.subr.mxu0 0.0
          %779 = vmatpush1.xpose.msra.mxu0 0.0
          %780 = vmatprep.subr.mxu0 0.0
          %781 = vmatpush1.xpose.msra.mxu0 0.0
          %782 = vmatprep.subr.mxu0 0.0
          %783 = vmatpush1.xpose.msra.mxu0 0.0
          %784 = vmatprep.subr.mxu0 0.0
          %785 = vmatpush1.xpose.msra.mxu0 0.0
          %786 = vmatprep.subr.mxu0 0.0
          %787 = vmatpush1.xpose.msra.mxu0 0.0
          %788 = vmatprep.mubr.f32.mxu0 0.0
          %789 = vmatmul.mubr.f32.gmra.mrb[0].mxu0 %v720
          %v790 = vpop.f32.mrb[0].mxu0
          %v791 = vadd.f32 %v543, %v790
          %v792 = vpop.f32.mrb[0].mxu0
          %793 = vdwg.mxu0
          %v794 = vsel %vm548, %v791, -inf
          %795 = vmax.xlane.f32.xlu0 %v794
          %v796 = vpop.xlane.xlu0 %795
          %v797 = vsub.f32 %v791, %v796
          %v798 = vmul.f32 %v797, 1.442695
          %v799 = vpow.pop %v798
          %v800 = vsel %vm548, %v799, 0.0
          %801 = vadd.xlane.f32.xlu0 %v800
          %v802 = vpop.xlane.xlu0 %801
          %v803 = vrcp.pop %v802
          %804 = vrot.lane.b32.xlu0 %v713, 56
          %v805 = vpop.permute.xlu0 %804
          %v808 = vsel %vm548, %v799, 0
          %810 = vmatprep.subr.mxu0 0.0
          %811 = vmatpush1.msra.mxu0 %v805
          %812 = vmatprep.subr.mxu0 0.0
          %813 = vmatpush1.msra.mxu0 0.0
          %814 = vmatprep.subr.mxu0 0.0
          %815 = vmatpush1.msra.mxu0 0.0
          %816 = vmatprep.subr.mxu0 0.0
          %817 = vmatpush1.msra.mxu0 0.0
          %818 = vmatprep.subr.mxu0 0.0
          %819 = vmatpush1.msra.mxu0 0.0
          %820 = vmatprep.subr.mxu0 0.0
          %821 = vmatpush1.msra.mxu0 0.0
          %822 = vmatprep.subr.mxu0 0.0
          %823 = vmatpush1.msra.mxu0 0.0
          %824 = vmatprep.subr.mxu0 0.0
          %825 = vmatpush1.msra.mxu0 0.0
          %826 = vmatprep.subr.mxu0 0.0
          %827 = vmatpush1.msra.mxu0 0.0
          %828 = vmatprep.subr.mxu0 0.0
          %829 = vmatpush1.msra.mxu0 0.0
          %830 = vmatprep.subr.mxu0 0.0
          %831 = vmatpush1.msra.mxu0 0.0
          %832 = vmatprep.subr.mxu0 0.0
          %833 = vmatpush1.msra.mxu0 0.0
          %834 = vmatprep.subr.mxu0 0.0
          %835 = vmatpush1.msra.mxu0 0.0
          %836 = vmatprep.subr.mxu0 0.0
          %837 = vmatpush1.msra.mxu0 0.0
          %838 = vmatprep.subr.mxu0 0.0
          %839 = vmatpush1.msra.mxu0 0.0
          %840 = vmatprep.subr.mxu0 0.0
          %841 = vmatpush1.msra.mxu0 0.0
          %842 = vmatprep.subr.mxu0 0.0
          %843 = vmatpush1.msra.mxu0 0.0
          %844 = vmatprep.subr.mxu0 0.0
          %845 = vmatpush1.msra.mxu0 0.0
          %846 = vmatprep.subr.mxu0 0.0
          %847 = vmatpush1.msra.mxu0 0.0
          %848 = vmatprep.subr.mxu0 0.0
          %849 = vmatpush1.msra.mxu0 0.0
          %850 = vmatprep.subr.mxu0 0.0
          %851 = vmatpush1.msra.mxu0 0.0
          %852 = vmatprep.subr.mxu0 0.0
          %853 = vmatpush1.msra.mxu0 0.0
          %854 = vmatprep.subr.mxu0 0.0
          %855 = vmatpush1.msra.mxu0 0.0
          %856 = vmatprep.subr.mxu0 0.0
          %857 = vmatpush1.msra.mxu0 0.0
          %858 = vmatprep.subr.mxu0 0.0
          %859 = vmatpush1.msra.mxu0 0.0
          %860 = vmatprep.subr.mxu0 0.0
          %861 = vmatpush1.msra.mxu0 0.0
          %862 = vmatprep.subr.mxu0 0.0
          %863 = vmatpush1.msra.mxu0 0.0
          %864 = vmatprep.subr.mxu0 0.0
          %865 = vmatpush1.msra.mxu0 0.0
          %866 = vmatprep.subr.mxu0 0.0
          %867 = vmatpush1.msra.mxu0 0.0
          %868 = vmatprep.subr.mxu0 0.0
          %869 = vmatpush1.msra.mxu0 0.0
          %870 = vmatprep.subr.mxu0 0.0
          %871 = vmatpush1.msra.mxu0 0.0
          %872 = vmatprep.subr.mxu0 0.0
          %873 = vmatpush1.msra.mxu0 0.0
          %874 = vmatprep.mubr.f32.mxu0 0.0
          %875 = vmatmul.mubr.f32.gmra.mrb[0].mxu0 %v808
          %v876 = vpop.f32.mrb[0].mxu0
          %v877 = vadd.f32 0.0, %v876
          %v878 = vpop.f32.mrb[0].mxu0
          %879 = vdwg.mxu0
          %v880 = vmul.f32 %v877, %v803
          %882 = vrot.lane.b32.xlu0 %v880, 8
          %v883 = vpop.permute.xlu0 %882
          %vm885 = vcmask 130112
          %886 = vst.msk [vmem:[#allocation3] sm:$0xff] %vm885, %v883
          %v887 = vld [vmem:[%s536] sm:$0xff]
          %v888 = vld [vmem:[#allocation2] sm:$0xff]
          %890 = vrot.lane.b32.xlu0 %v887, 112
          %v891 = vpop.permute.xlu0 %890
          %893 = vrot.lane.b32.xlu0 %v888, 80
          %v894 = vpop.permute.xlu0 %893
          %v895 = vsel %vm548, %v891, 0
          %v897 = vsel %vm548, %v894, 0
          %899 = vmatprep.subr.mxu0 0.0
          %900 = vmatpush1.xpose.msra.mxu0 %v897
          %901 = vmatprep.subr.mxu0 0.0
          %902 = vmatpush1.xpose.msra.mxu0 0.0
          %903 = vmatprep.subr.mxu0 0.0
          %904 = vmatpush1.xpose.msra.mxu0 0.0
          %905 = vmatprep.subr.mxu0 0.0
          %906 = vmatpush1.xpose.msra.mxu0 0.0
          %907 = vmatprep.subr.mxu0 0.0
          %908 = vmatpush1.xpose.msra.mxu0 0.0
          %909 = vmatprep.subr.mxu0 0.0
          %910 = vmatpush1.xpose.msra.mxu0 0.0
          %911 = vmatprep.subr.mxu0 0.0
          %912 = vmatpush1.xpose.msra.mxu0 0.0
          %913 = vmatprep.subr.mxu0 0.0
          %914 = vmatpush1.xpose.msra.mxu0 0.0
          %915 = vmatprep.subr.mxu0 0.0
          %916 = vmatpush1.xpose.msra.mxu0 0.0
          %917 = vmatprep.subr.mxu0 0.0
          %918 = vmatpush1.xpose.msra.mxu0 0.0
          %919 = vmatprep.subr.mxu0 0.0
          %920 = vmatpush1.xpose.msra.mxu0 0.0
          %921 = vmatprep.subr.mxu0 0.0
          %922 = vmatpush1.xpose.msra.mxu0 0.0
          %923 = vmatprep.subr.mxu0 0.0
          %924 = vmatpush1.xpose.msra.mxu0 0.0
          %925 = vmatprep.subr.mxu0 0.0
          %926 = vmatpush1.xpose.msra.mxu0 0.0
          %927 = vmatprep.subr.mxu0 0.0
          %928 = vmatpush1.xpose.msra.mxu0 0.0
          %929 = vmatprep.subr.mxu0 0.0
          %930 = vmatpush1.xpose.msra.mxu0 0.0
          %931 = vmatprep.subr.mxu0 0.0
          %932 = vmatpush1.xpose.msra.mxu0 0.0
          %933 = vmatprep.subr.mxu0 0.0
          %934 = vmatpush1.xpose.msra.mxu0 0.0
          %935 = vmatprep.subr.mxu0 0.0
          %936 = vmatpush1.xpose.msra.mxu0 0.0
          %937 = vmatprep.subr.mxu0 0.0
          %938 = vmatpush1.xpose.msra.mxu0 0.0
          %939 = vmatprep.subr.mxu0 0.0
          %940 = vmatpush1.xpose.msra.mxu0 0.0
          %941 = vmatprep.subr.mxu0 0.0
          %942 = vmatpush1.xpose.msra.mxu0 0.0
          %943 = vmatprep.subr.mxu0 0.0
          %944 = vmatpush1.xpose.msra.mxu0 0.0
          %945 = vmatprep.subr.mxu0 0.0
          %946 = vmatpush1.xpose.msra.mxu0 0.0
          %947 = vmatprep.subr.mxu0 0.0
          %948 = vmatpush1.xpose.msra.mxu0 0.0
          %949 = vmatprep.subr.mxu0 0.0
          %950 = vmatpush1.xpose.msra.mxu0 0.0
          %951 = vmatprep.subr.mxu0 0.0
          %952 = vmatpush1.xpose.msra.mxu0 0.0
          %953 = vmatprep.subr.mxu0 0.0
          %954 = vmatpush1.xpose.msra.mxu0 0.0
          %955 = vmatprep.subr.mxu0 0.0
          %956 = vmatpush1.xpose.msra.mxu0 0.0
          %957 = vmatprep.subr.mxu0 0.0
          %958 = vmatpush1.xpose.msra.mxu0 0.0
          %959 = vmatprep.subr.mxu0 0.0
          %960 = vmatpush1.xpose.msra.mxu0 0.0
          %961 = vmatprep.subr.mxu0 0.0
          %962 = vmatpush1.xpose.msra.mxu0 0.0
          %963 = vmatprep.mubr.f32.mxu0 0.0
          %964 = vmatmul.mubr.f32.gmra.mrb[0].mxu0 %v895
          %v965 = vpop.f32.mrb[0].mxu0
          %v966 = vadd.f32 %v543, %v965
          %v967 = vpop.f32.mrb[0].mxu0
          %968 = vdwg.mxu0
          %v969 = vsel %vm548, %v966, -inf
          %970 = vmax.xlane.f32.xlu0 %v969
          %v971 = vpop.xlane.xlu0 %970
          %v972 = vsub.f32 %v966, %v971
          %v973 = vmul.f32 %v972, 1.442695
          %v974 = vpow.pop %v973
          %v975 = vsel %vm548, %v974, 0.0
          %976 = vadd.xlane.f32.xlu0 %v975
          %v977 = vpop.xlane.xlu0 %976
          %v978 = vrcp.pop %v977
          %979 = vrot.lane.b32.xlu0 %v888, 48
          %v980 = vpop.permute.xlu0 %979
          %v983 = vsel %vm548, %v974, 0
          %985 = vmatprep.subr.mxu0 0.0
          %986 = vmatpush1.msra.mxu0 %v980
          %987 = vmatprep.subr.mxu0 0.0
          %988 = vmatpush1.msra.mxu0 0.0
          %989 = vmatprep.subr.mxu0 0.0
          %990 = vmatpush1.msra.mxu0 0.0
          %991 = vmatprep.subr.mxu0 0.0
          %992 = vmatpush1.msra.mxu0 0.0
          %993 = vmatprep.subr.mxu0 0.0
          %994 = vmatpush1.msra.mxu0 0.0
          %995 = vmatprep.subr.mxu0 0.0
          %996 = vmatpush1.msra.mxu0 0.0
          %997 = vmatprep.subr.mxu0 0.0
          %998 = vmatpush1.msra.mxu0 0.0
          %999 = vmatprep.subr.mxu0 0.0
          %1000 = vmatpush1.msra.mxu0 0.0
          %1001 = vmatprep.subr.mxu0 0.0
          %1002 = vmatpush1.msra.mxu0 0.0
          %1003 = vmatprep.subr.mxu0 0.0
          %1004 = vmatpush1.msra.mxu0 0.0
          %1005 = vmatprep.subr.mxu0 0.0
          %1006 = vmatpush1.msra.mxu0 0.0
          %1007 = vmatprep.subr.mxu0 0.0
          %1008 = vmatpush1.msra.mxu0 0.0
          %1009 = vmatprep.subr.mxu0 0.0
          %1010 = vmatpush1.msra.mxu0 0.0
          %1011 = vmatprep.subr.mxu0 0.0
          %1012 = vmatpush1.msra.mxu0 0.0
          %1013 = vmatprep.subr.mxu0 0.0
          %1014 = vmatpush1.msra.mxu0 0.0
          %1015 = vmatprep.subr.mxu0 0.0
          %1016 = vmatpush1.msra.mxu0 0.0
          %1017 = vmatprep.subr.mxu0 0.0
          %1018 = vmatpush1.msra.mxu0 0.0
          %1019 = vmatprep.subr.mxu0 0.0
          %1020 = vmatpush1.msra.mxu0 0.0
          %1021 = vmatprep.subr.mxu0 0.0
          %1022 = vmatpush1.msra.mxu0 0.0
          %1023 = vmatprep.subr.mxu0 0.0
          %1024 = vmatpush1.msra.mxu0 0.0
          %1025 = vmatprep.subr.mxu0 0.0
          %1026 = vmatpush1.msra.mxu0 0.0
          %1027 = vmatprep.subr.mxu0 0.0
          %1028 = vmatpush1.msra.mxu0 0.0
          %1029 = vmatprep.subr.mxu0 0.0
          %1030 = vmatpush1.msra.mxu0 0.0
          %1031 = vmatprep.subr.mxu0 0.0
          %1032 = vmatpush1.msra.mxu0 0.0
          %1033 = vmatprep.subr.mxu0 0.0
          %1034 = vmatpush1.msra.mxu0 0.0
          %1035 = vmatprep.subr.mxu0 0.0
          %1036 = vmatpush1.msra.mxu0 0.0
          %1037 = vmatprep.subr.mxu0 0.0
          %1038 = vmatpush1.msra.mxu0 0.0
          %1039 = vmatprep.subr.mxu0 0.0
          %1040 = vmatpush1.msra.mxu0 0.0
          %1041 = vmatprep.subr.mxu0 0.0
          %1042 = vmatpush1.msra.mxu0 0.0
          %1043 = vmatprep.subr.mxu0 0.0
          %1044 = vmatpush1.msra.mxu0 0.0
          %1045 = vmatprep.subr.mxu0 0.0
          %1046 = vmatpush1.msra.mxu0 0.0
          %1047 = vmatprep.subr.mxu0 0.0
          %1048 = vmatpush1.msra.mxu0 0.0
          %1049 = vmatprep.mubr.f32.mxu0 0.0
          %1050 = vmatmul.mubr.f32.gmra.mrb[0].mxu0 %v983
          %v1051 = vpop.f32.mrb[0].mxu0
          %v1052 = vadd.f32 0.0, %v1051
          %v1053 = vpop.f32.mrb[0].mxu0
          %1054 = vdwg.mxu0
          %v1055 = vmul.f32 %v1052, %v978
          %1057 = vrot.lane.b32.xlu0 %v1055, 16
          %v1058 = vpop.permute.xlu0 %1057
          %vm1060 = vcmask 195712
          %1061 = vst.msk [vmem:[#allocation3] sm:$0xff] %vm1060, %v1058
          %v1062 = vld [vmem:[%s536] sm:$0xff]
          %v1063 = vld [vmem:[#allocation2] sm:$0xff]
          %1065 = vrot.lane.b32.xlu0 %v1062, 104
          %v1066 = vpop.permute.xlu0 %1065
          %1068 = vrot.lane.b32.xlu0 %v1063, 72
          %v1069 = vpop.permute.xlu0 %1068
          %v1070 = vsel %vm548, %v1066, 0
          %v1072 = vsel %vm548, %v1069, 0
          %1074 = vmatprep.subr.mxu0 0.0
          %1075 = vmatpush1.xpose.msra.mxu0 %v1072
          %1076 = vmatprep.subr.mxu0 0.0
          %1077 = vmatpush1.xpose.msra.mxu0 0.0
          %1078 = vmatprep.subr.mxu0 0.0
          %1079 = vmatpush1.xpose.msra.mxu0 0.0
          %1080 = vmatprep.subr.mxu0 0.0
          %1081 = vmatpush1.xpose.msra.mxu0 0.0
          %1082 = vmatprep.subr.mxu0 0.0
          %1083 = vmatpush1.xpose.msra.mxu0 0.0
          %1084 = vmatprep.subr.mxu0 0.0
          %1085 = vmatpush1.xpose.msra.mxu0 0.0
          %1086 = vmatprep.subr.mxu0 0.0
          %1087 = vmatpush1.xpose.msra.mxu0 0.0
          %1088 = vmatprep.subr.mxu0 0.0
          %1089 = vmatpush1.xpose.msra.mxu0 0.0
          %1090 = vmatprep.subr.mxu0 0.0
          %1091 = vmatpush1.xpose.msra.mxu0 0.0
          %1092 = vmatprep.subr.mxu0 0.0
          %1093 = vmatpush1.xpose.msra.mxu0 0.0
          %1094 = vmatprep.subr.mxu0 0.0
          %1095 = vmatpush1.xpose.msra.mxu0 0.0
          %1096 = vmatprep.subr.mxu0 0.0
          %1097 = vmatpush1.xpose.msra.mxu0 0.0
          %1098 = vmatprep.subr.mxu0 0.0
          %1099 = vmatpush1.xpose.msra.mxu0 0.0
          %1100 = vmatprep.subr.mxu0 0.0
          %1101 = vmatpush1.xpose.msra.mxu0 0.0
          %1102 = vmatprep.subr.mxu0 0.0
          %1103 = vmatpush1.xpose.msra.mxu0 0.0
          %1104 = vmatprep.subr.mxu0 0.0
          %1105 = vmatpush1.xpose.msra.mxu0 0.0
          %1106 = vmatprep.subr.mxu0 0.0
          %1107 = vmatpush1.xpose.msra.mxu0 0.0
          %1108 = vmatprep.subr.mxu0 0.0
          %1109 = vmatpush1.xpose.msra.mxu0 0.0
          %1110 = vmatprep.subr.mxu0 0.0
          %1111 = vmatpush1.xpose.msra.mxu0 0.0
          %1112 = vmatprep.subr.mxu0 0.0
          %1113 = vmatpush1.xpose.msra.mxu0 0.0
          %1114 = vmatprep.subr.mxu0 0.0
          %1115 = vmatpush1.xpose.msra.mxu0 0.0
          %1116 = vmatprep.subr.mxu0 0.0
          %1117 = vmatpush1.xpose.msra.mxu0 0.0
          %1118 = vmatprep.subr.mxu0 0.0
          %1119 = vmatpush1.xpose.msra.mxu0 0.0
          %1120 = vmatprep.subr.mxu0 0.0
          %1121 = vmatpush1.xpose.msra.mxu0 0.0
          %1122 = vmatprep.subr.mxu0 0.0
          %1123 = vmatpush1.xpose.msra.mxu0 0.0
          %1124 = vmatprep.subr.mxu0 0.0
          %1125 = vmatpush1.xpose.msra.mxu0 0.0
          %1126 = vmatprep.subr.mxu0 0.0
          %1127 = vmatpush1.xpose.msra.mxu0 0.0
          %1128 = vmatprep.subr.mxu0 0.0
          %1129 = vmatpush1.xpose.msra.mxu0 0.0
          %1130 = vmatprep.subr.mxu0 0.0
          %1131 = vmatpush1.xpose.msra.mxu0 0.0
          %1132 = vmatprep.subr.mxu0 0.0
          %1133 = vmatpush1.xpose.msra.mxu0 0.0
          %1134 = vmatprep.subr.mxu0 0.0
          %1135 = vmatpush1.xpose.msra.mxu0 0.0
          %1136 = vmatprep.subr.mxu0 0.0
          %1137 = vmatpush1.xpose.msra.mxu0 0.0
          %1138 = vmatprep.mubr.f32.mxu0 0.0
          %1139 = vmatmul.mubr.f32.gmra.mrb[0].mxu0 %v1070
          %v1140 = vpop.f32.mrb[0].mxu0
          %v1141 = vadd.f32 %v543, %v1140
          %v1142 = vpop.f32.mrb[0].mxu0
          %1143 = vdwg.mxu0
          %v1144 = vsel %vm548, %v1141, -inf
          %1145 = vmax.xlane.f32.xlu0 %v1144
          %v1146 = vpop.xlane.xlu0 %1145
          %v1147 = vsub.f32 %v1141, %v1146
          %v1148 = vmul.f32 %v1147, 1.442695
          %v1149 = vpow.pop %v1148
          %v1150 = vsel %vm548, %v1149, 0.0
          %1151 = vadd.xlane.f32.xlu0 %v1150
          %v1152 = vpop.xlane.xlu0 %1151
          %v1153 = vrcp.pop %v1152
          %1154 = vrot.lane.b32.xlu0 %v1063, 40
          %v1155 = vpop.permute.xlu0 %1154
          %v1158 = vsel %vm548, %v1149, 0
          %1160 = vmatprep.subr.mxu0 0.0
          %1161 = vmatpush1.msra.mxu0 %v1155
          %1162 = vmatprep.subr.mxu0 0.0
          %1163 = vmatpush1.msra.mxu0 0.0
          %1164 = vmatprep.subr.mxu0 0.0
          %1165 = vmatpush1.msra.mxu0 0.0
          %1166 = vmatprep.subr.mxu0 0.0
          %1167 = vmatpush1.msra.mxu0 0.0
          %1168 = vmatprep.subr.mxu0 0.0
          %1169 = vmatpush1.msra.mxu0 0.0
          %1170 = vmatprep.subr.mxu0 0.0
          %1171 = vmatpush1.msra.mxu0 0.0
          %1172 = vmatprep.subr.mxu0 0.0
          %1173 = vmatpush1.msra.mxu0 0.0
          %1174 = vmatprep.subr.mxu0 0.0
          %1175 = vmatpush1.msra.mxu0 0.0
          %1176 = vmatprep.subr.mxu0 0.0
          %1177 = vmatpush1.msra.mxu0 0.0
          %1178 = vmatprep.subr.mxu0 0.0
          %1179 = vmatpush1.msra.mxu0 0.0
          %1180 = vmatprep.subr.mxu0 0.0
          %1181 = vmatpush1.msra.mxu0 0.0
          %1182 = vmatprep.subr.mxu0 0.0
          %1183 = vmatpush1.msra.mxu0 0.0
          %1184 = vmatprep.subr.mxu0 0.0
          %1185 = vmatpush1.msra.mxu0 0.0
          %1186 = vmatprep.subr.mxu0 0.0
          %1187 = vmatpush1.msra.mxu0 0.0
          %1188 = vmatprep.subr.mxu0 0.0
          %1189 = vmatpush1.msra.mxu0 0.0
          %1190 = vmatprep.subr.mxu0 0.0
          %1191 = vmatpush1.msra.mxu0 0.0
          %1192 = vmatprep.subr.mxu0 0.0
          %1193 = vmatpush1.msra.mxu0 0.0
          %1194 = vmatprep.subr.mxu0 0.0
          %1195 = vmatpush1.msra.mxu0 0.0
          %1196 = vmatprep.subr.mxu0 0.0
          %1197 = vmatpush1.msra.mxu0 0.0
          %1198 = vmatprep.subr.mxu0 0.0
          %1199 = vmatpush1.msra.mxu0 0.0
          %1200 = vmatprep.subr.mxu0 0.0
          %1201 = vmatpush1.msra.mxu0 0.0
          %1202 = vmatprep.subr.mxu0 0.0
          %1203 = vmatpush1.msra.mxu0 0.0
          %1204 = vmatprep.subr.mxu0 0.0
          %1205 = vmatpush1.msra.mxu0 0.0
          %1206 = vmatprep.subr.mxu0 0.0
          %1207 = vmatpush1.msra.mxu0 0.0
          %1208 = vmatprep.subr.mxu0 0.0
          %1209 = vmatpush1.msra.mxu0 0.0
          %1210 = vmatprep.subr.mxu0 0.0
          %1211 = vmatpush1.msra.mxu0 0.0
          %1212 = vmatprep.subr.mxu0 0.0
          %1213 = vmatpush1.msra.mxu0 0.0
          %1214 = vmatprep.subr.mxu0 0.0
          %1215 = vmatpush1.msra.mxu0 0.0
          %1216 = vmatprep.subr.mxu0 0.0
          %1217 = vmatpush1.msra.mxu0 0.0
          %1218 = vmatprep.subr.mxu0 0.0
          %1219 = vmatpush1.msra.mxu0 0.0
          %1220 = vmatprep.subr.mxu0 0.0
          %1221 = vmatpush1.msra.mxu0 0.0
          %1222 = vmatprep.subr.mxu0 0.0
          %1223 = vmatpush1.msra.mxu0 0.0
          %1224 = vmatprep.mubr.f32.mxu0 0.0
          %1225 = vmatmul.mubr.f32.gmra.mrb[0].mxu0 %v1158
          %v1226 = vpop.f32.mrb[0].mxu0
          %v1227 = vadd.f32 0.0, %v1226
          %v1228 = vpop.f32.mrb[0].mxu0
          %1229 = vdwg.mxu0
          %v1230 = vmul.f32 %v1227, %v1153
          %1232 = vrot.lane.b32.xlu0 %v1230, 24
          %v1233 = vpop.permute.xlu0 %1232
          %vm1235 = vcmask 261312
          %1236 = vst.msk [vmem:[#allocation3] sm:$0xff] %vm1235, %v1233
          %v1237 = vld [vmem:[#allocation3] sm:$0xff]
          %v1238 = vld [vmem:[#allocation10] sm:$0xff]
          %v1239 = vld [vmem:[#allocation10 + $0x8] sm:$0xff]
          %v1240 = vld [vmem:[#allocation10 + $0x10] sm:$0xff]
          %v1241 = vld [vmem:[#allocation10 + $0x18] sm:$0xff]
          %v1242 = vld [vmem:[%s5] sm:$0x1]
          %v1244 = vlaneseq
          %v1245 = vshrl.u32 %v1244, 7
          %v1246 = vsub.s32 0, %v1245
          %v1247 = vrot.slane %v1242, %v1246
          %vm1249 = vcmask 261120
          %v1251 = vsel %vm1249, %v1237, 0
          %1253 = vmatprep.subr.mxu0 0.0
          %1254 = vmatpush1.msra.mxu0 %v1238
          %1255 = vmatprep.subr.mxu0 0.0
          %1256 = vmatpush1.msra.mxu0 %v1239
          %1257 = vmatprep.subr.mxu0 0.0
          %1258 = vmatpush1.msra.mxu0 %v1240
          %1259 = vmatprep.subr.mxu0 0.0
          %1260 = vmatpush1.msra.mxu0 %v1241
          %1261 = vmatprep.subr.mxu0 0.0
          %1262 = vmatpush1.msra.mxu0 0.0
          %1263 = vmatprep.subr.mxu0 0.0
          %1264 = vmatpush1.msra.mxu0 0.0
          %1265 = vmatprep.subr.mxu0 0.0
          %1266 = vmatpush1.msra.mxu0 0.0
          %1267 = vmatprep.subr.mxu0 0.0
          %1268 = vmatpush1.msra.mxu0 0.0
          %1269 = vmatprep.subr.mxu0 0.0
          %1270 = vmatpush1.msra.mxu0 0.0
          %1271 = vmatprep.subr.mxu0 0.0
          %1272 = vmatpush1.msra.mxu0 0.0
          %1273 = vmatprep.subr.mxu0 0.0
          %1274 = vmatpush1.msra.mxu0 0.0
          %1275 = vmatprep.subr.mxu0 0.0
          %1276 = vmatpush1.msra.mxu0 0.0
          %1277 = vmatprep.subr.mxu0 0.0
          %1278 = vmatpush1.msra.mxu0 0.0
          %1279 = vmatprep.subr.mxu0 0.0
          %1280 = vmatpush1.msra.mxu0 0.0
          %1281 = vmatprep.subr.mxu0 0.0
          %1282 = vmatpush1.msra.mxu0 0.0
          %1283 = vmatprep.subr.mxu0 0.0
          %1284 = vmatpush1.msra.mxu0 0.0
          %1285 = vmatprep.subr.mxu0 0.0
          %1286 = vmatpush1.msra.mxu0 0.0
          %1287 = vmatprep.subr.mxu0 0.0
          %1288 = vmatpush1.msra.mxu0 0.0
          %1289 = vmatprep.subr.mxu0 0.0
          %1290 = vmatpush1.msra.mxu0 0.0
          %1291 = vmatprep.subr.mxu0 0.0
          %1292 = vmatpush1.msra.mxu0 0.0
          %1293 = vmatprep.subr.mxu0 0.0
          %1294 = vmatpush1.msra.mxu0 0.0
          %1295 = vmatprep.subr.mxu0 0.0
          %1296 = vmatpush1.msra.mxu0 0.0
          %1297 = vmatprep.subr.mxu0 0.0
          %1298 = vmatpush1.msra.mxu0 0.0
          %1299 = vmatprep.subr.mxu0 0.0
          %1300 = vmatpush1.msra.mxu0 0.0
          %1301 = vmatprep.subr.mxu0 0.0
          %1302 = vmatpush1.msra.mxu0 0.0
          %1303 = vmatprep.subr.mxu0 0.0
          %1304 = vmatpush1.msra.mxu0 0.0
          %1305 = vmatprep.subr.mxu0 0.0
          %1306 = vmatpush1.msra.mxu0 0.0
          %1307 = vmatprep.subr.mxu0 0.0
          %1308 = vmatpush1.msra.mxu0 0.0
          %1309 = vmatprep.subr.mxu0 0.0
          %1310 = vmatpush1.msra.mxu0 0.0
          %1311 = vmatprep.subr.mxu0 0.0
          %1312 = vmatpush1.msra.mxu0 0.0
          %1313 = vmatprep.subr.mxu0 0.0
          %1314 = vmatpush1.msra.mxu0 0.0
          %1315 = vmatprep.subr.mxu0 0.0
          %1316 = vmatpush1.msra.mxu0 0.0
          %1317 = vmatprep.mubr.f32.mxu0 0.0
          %1318 = vmatmul.mubr.f32.gmra.mrb[0].mxu0 %v1251
          %v1319 = vpop.f32.mrb[0].mxu0
          %v1320 = vadd.f32 %v1247, %v1319
          %v1321 = vpop.f32.mrb[0].mxu0
          %1322 = vdwg.mxu0
          %1323 = vst.msk [vmem:[%s403] sm:$0xff] %vm1249, %v1320
        $region76: #{tpu_custom_call.1} parent=51 // pred_fallthru
          _
        %s1324 = sand.u32 %s235, 1
        %s1325 = scalar_lea.sflag [#allocation6], %s1324
        %s1326 = sand.u32 %s235, 1
        %s1327 = smul.addr %s1326, 8
        %s1328 = scalar_lea.vmem [#allocation12], %s1327
        // Predicated region
        $region77: #{tpu_custom_call.1} parent=51 // pred_check
          %p1329 = pneg %p245
        $region78: #{tpu_custom_call.1} parent=51 // pred_check_branch
          %1331 = sbr.rel (%p1329) target = $region80
        $region79: #{tpu_custom_call.1} parent=51 // pred_region
          %s1332 = ssub.s32 %s34, 1
          %p1333 = scmp.gt.s32.totalorder %s1332, 0
          %s1334 = scalar_select %p1333, %s1332, 0
          %s1336 = ssub.s32 128, 128
          %1337 = vsyncadd %s1325, %s1336
          %s1338 = sadd.s32 %s1334, %s33
          %s1339 = smul.addr %s1338, 128
          %s1340 = scalar_lea.hbm %s8, %s1339
          %s1342 = sshll.u32 %s1328, 4
          %s1343 = int_to_ptr.vmem [resolvable:$true] %s1342
          %1345 = dma.vmem_to_hbm [thread:$0]  %s1343, 128, %s1340, %s1325
        $region80: #{tpu_custom_call.1} parent=51 // pred_fallthru
          _
      $region52: #{tpu_custom_call.1} parent=5 // pred_fallthru
        _
      %p1346 = scmp.le.s32.totalorder 2, %s24
      // Predicated region
      $region81: #{tpu_custom_call.1} parent=5 // pred_check
        %p1347 = pneg %p1346
      $region82: #{tpu_custom_call.1} parent=5 // pred_check_branch
        %1349 = sbr.rel (%p1347) target = $region84
      $region83: #{tpu_custom_call.1} parent=5 // pred_region
        %s1350 = ssub.s32 %s24, 2
        // Predicated region
        $region85: #{tpu_custom_call.1} parent=83 // pred_check
          %p1351 = pneg %p251
        $region86: #{tpu_custom_call.1} parent=83 // pred_check_branch
          %1353 = sbr.rel (%p1351) target = $region88
        $region87: #{tpu_custom_call.1} parent=83 // pred_region
          %s1354 = sand.u32 %s236, 1
          %s1355 = scalar_lea.sflag [#allocation6], %s1354
          %s1356 = sand.u32 %s236, 1
          %s1357 = smul.addr %s1356, 8
          %s1358 = scalar_lea.vmem [#allocation12], %s1357
          %1359 = dma.done %s1355, 128
        $region88: #{tpu_custom_call.1} parent=83 // pred_fallthru
          _
      $region84: #{tpu_custom_call.1} parent=5 // pred_fallthru
        _
    $region6: #{tpu_custom_call.1} parent=1 // loop_footer
      %s28 = sadd.s32 1, %s24
    $region7: #{tpu_custom_call.1} parent=1 // loop_footer_branch
      %23 = sbr.rel target = $region3
    $region8: #{tpu_custom_call.1} parent=1 // loop_exit
      _
    %1360 = vsyncpa [#allocation5], 1
    %s1361 = scalar_lea.sflag [#allocation5], 1
    %1362 = vsyncpa %s1361, 1
    %1363 = vsyncpa [#allocation8], 1
    %s1364 = scalar_lea.sflag [#allocation8], 1
    %1365 = vsyncpa %s1364, 1
    %1366 = vsyncpa [#allocation11], 1
    %1367 = vsyncpa [#allocation6], 1
    %s1368 = scalar_lea.sflag [#allocation6], 1
    %1369 = vsyncpa %s1368, 1

</llo_original>
